<compile_context>
chip_gen: v6e
topology: v6e:2x2x1
jax: 0.10.0
libtpu: 0.0.40
codegen_flags: <defaults>
</compile_context>

<pallas_src>
import jax
import jax.numpy as jnp
import numpy as np
from jax import lax
from jax.experimental import pallas as pl
from jax.experimental.pallas import tpu as pltpu

HIDDEN = 32
FC1_OUT = 128
FC2_OUT = 8
OUT_DIM = 2
OUT_PAD = 128     # lane-dense kernel output width
SUBLANE = 8


def _var_rnn_kernel(seqs_ref, lens_ref, maxlen_ref,
                    w1_ref, b1_ref,
                    wih_ref, bih_ref, whh_ref, bhh_ref,
                    w2_ref, b2_ref, w3_ref, b3_ref,
                    out_ref, gx_ref):
    T, B, D = seqs_ref.shape
    H = HIDDEN

    # ---- hoisted, non-recurrent compute (one pass over all timesteps) -----
    x2d = seqs_ref[...].reshape(T * B, D)
    xp = jnp.tanh(
        jnp.dot(x2d, w1_ref[...], preferred_element_type=jnp.float32)
        + b1_ref[...])                                            # [T*B, 128]
    gx = (jnp.dot(xp, wih_ref[...], preferred_element_type=jnp.float32)
          + bih_ref[...])                                         # [T*B, 3H]
    gx_ref[...] = gx.reshape(T, B, 3 * H)                         # time-major scratch

    lens = lens_ref[...]                                          # [B, 1] int32

    # ---- recurrence: one small matmul + gate math per step ----------------
    def step(t, h):
        gx_t = gx_ref[t]                                          # [B, 3H]
        gh = (jnp.dot(h, whh_ref[...], preferred_element_type=jnp.float32)
              + bhh_ref[...])                                     # [B, 3H]
        s = gx_t + gh
        rz = jax.nn.sigmoid(s[:, :2 * H])                         # r|z in one EUP pass
        r = rz[:, :H]
        z = rz[:, H:]
        n = jnp.tanh(gx_t[:, 2 * H:] + r * gh[:, 2 * H:])
        h_new = (1.0 - z) * n + z * h
        # packed-sequence semantics: freeze hidden state past each length
        return jnp.where(lens > t, h_new, h)

    h0 = jnp.zeros((B, H), jnp.float32)
    h_last = lax.fori_loop(0, T, step, h0, unroll=True)

    # ---- pad_packed + seqs[:, -1, :] select + head -------------------------
    keep = lens >= maxlen_ref[0]                                  # [B, 1] bool
    a = jnp.tanh(jnp.where(keep, h_last, 0.0))
    y = jnp.dot(a, w2_ref[...], preferred_element_type=jnp.float32) + b2_ref[...]
    y = jnp.dot(y, w3_ref[...], preferred_element_type=jnp.float32) + b3_ref[...]
    out_ref[...] = y                                              # [B, 128] lane-dense


def my_variable_rnn(seqs, lengths, params):
    """seqs: [B, T, D_in] float32 (batch-first, like PyTorch); lengths: [B] int."""
    (w1, b1, wir, wiz, win, whr, whz, whn,
     bir, biz, bin_, bhr, bhz, bhn, w2, b2, w3, b3) = params
    B, T, D = seqs.shape
    B_pad = -(-B // SUBLANE) * SUBLANE

    # pack GRU gate weights lane-dense: [in, 3H] in PyTorch (r, z, n) order
    w_ih = jnp.concatenate([wir, wiz, win], axis=1)               # [128, 96]
    b_ih = jnp.concatenate([bir, biz, bin_], axis=1)              # [1, 96]
    w_hh = jnp.concatenate([whr, whz, whn], axis=1)               # [32, 96]
    b_hh = jnp.concatenate([bhr, bhz, bhn], axis=1)               # [1, 96]
    # zero-pad fc3 so the kernel's output store is a full 128-lane tile
    w3p = jnp.pad(w3, ((0, 0), (0, OUT_PAD - OUT_DIM)))           # [8, 128]
    b3p = jnp.pad(b3, ((0, 0), (0, OUT_PAD - OUT_DIM)))           # [1, 128]

    seqs_f = seqs.astype(jnp.float32)
    lens = lengths.astype(jnp.int32)
    if B_pad != B:
        seqs_f = jnp.pad(seqs_f, ((0, B_pad - B), (0, 0), (0, 0)))
        lens = jnp.pad(lens, (0, B_pad - B))
    seqs_tm = jnp.transpose(seqs_f, (1, 0, 2))                    # [T, B_pad, D]
    lens2 = lens.reshape(B_pad, 1)
    maxlen = jnp.max(lengths).astype(jnp.int32).reshape(1)

    vmem = pl.BlockSpec(memory_space=pltpu.MemorySpace.VMEM)
    smem = pl.BlockSpec(memory_space=pltpu.MemorySpace.SMEM)
    args = (seqs_tm, lens2, maxlen,
            w1, b1, w_ih, b_ih, w_hh, b_hh, w2, b2, w3p, b3p)
    in_specs = [vmem, vmem, smem] + [vmem] * 10

    out = pl.pallas_call(
        _var_rnn_kernel,
        out_shape=jax.ShapeDtypeStruct((B_pad, OUT_PAD), jnp.float32),
        in_specs=in_specs,
        out_specs=vmem,
        scratch_shapes=[pltpu.VMEM((T, B_pad, 3 * HIDDEN), jnp.float32)],
    )(*args)
    return out[:B, :OUT_DIM]


def init_params(key, dim_input):
    """Deterministic synthetic params, shapes matching MyVariableRNN.__init__."""
    ks = jax.random.split(key, 20)

    def u(k, shape, fan_in):
        bound = 1.0 / np.sqrt(fan_in)
        return jax.random.uniform(k, shape, jnp.float32, -bound, bound)

    w1 = u(ks[0], (dim_input, FC1_OUT), dim_input)
    b1 = u(ks[1], (1, FC1_OUT), dim_input)
    # GRU weights (stored transposed: [in, out]); PyTorch fan = hidden_size
    wir = u(ks[2], (FC1_OUT, HIDDEN), HIDDEN)
    wiz = u(ks[3], (FC1_OUT, HIDDEN), HIDDEN)
    win = u(ks[4], (FC1_OUT, HIDDEN), HIDDEN)
    whr = u(ks[5], (HIDDEN, HIDDEN), HIDDEN)
    whz = u(ks[6], (HIDDEN, HIDDEN), HIDDEN)
    whn = u(ks[7], (HIDDEN, HIDDEN), HIDDEN)
    bir = u(ks[8], (1, HIDDEN), HIDDEN)
    biz = u(ks[9], (1, HIDDEN), HIDDEN)
    bin_ = u(ks[10], (1, HIDDEN), HIDDEN)
    bhr = u(ks[11], (1, HIDDEN), HIDDEN)
    bhz = u(ks[12], (1, HIDDEN), HIDDEN)
    bhn = u(ks[13], (1, HIDDEN), HIDDEN)
    w2 = u(ks[14], (HIDDEN, FC2_OUT), HIDDEN)
    b2 = u(ks[15], (1, FC2_OUT), HIDDEN)
    w3 = u(ks[16], (FC2_OUT, OUT_DIM), FC2_OUT)
    b3 = u(ks[17], (1, OUT_DIM), FC2_OUT)
    return (w1, b1, wir, wiz, win, whr, whz, whn,
            bir, biz, bin_, bhr, bhz, bhn, w2, b2, w3, b3)


def reference_forward(seqs, lengths, params):
    """Pure-JAX reference of MyVariableRNN.forward for validation."""
    (w1, b1, wir, wiz, win, whr, whz, whn,
     bir, biz, bin_, bhr, bhz, bhn, w2, b2, w3, b3) = params
    B, T, _ = seqs.shape
    x = jnp.tanh(seqs @ w1 + b1)                                  # [B, T, 128]
    h = jnp.zeros((B, HIDDEN), jnp.float32)

    def step(h, t):
        xt = x[:, t, :]
        r = jax.nn.sigmoid(xt @ wir + bir + h @ whr + bhr)
        z = jax.nn.sigmoid(xt @ wiz + biz + h @ whz + bhz)
        n = jnp.tanh(xt @ win + bin_ + r * (h @ whn + bhn))
        h_new = (1 - z) * n + z * h
        upd = (lengths[:, None] > t).astype(jnp.float32)
        return upd * h_new + (1 - upd) * h, None

    h_last, _ = jax.lax.scan(step, h, jnp.arange(T))
    keep = (lengths[:, None] >= jnp.max(lengths)).astype(jnp.float32)
    a = jnp.tanh(h_last * keep)
    return (a @ w2 + b2) @ w3 + b3


if __name__ == "__main__":
    key = jax.random.PRNGKey(0)
    k_param, k_data = jax.random.split(key)

    B, T, D_IN = 4, 8, 16
    params = init_params(k_param, D_IN)
    seqs = jax.random.normal(k_data, (B, T, D_IN), jnp.float32)
    lengths = jnp.array([8, 8, 5, 3], dtype=jnp.int32)            # sorted descending

    out = my_variable_rnn(seqs, lengths, params)
    out = jax.block_until_ready(out)

    ref = jax.block_until_ready(reference_forward(seqs, lengths, params))
    np.testing.assert_allclose(np.asarray(out), np.asarray(ref),
                               rtol=1e-3, atol=1e-3)
    print("KERNEL_OK")
</pallas_src>

<mosaic_0001>
module attributes {stable_mosaic.version = 11 : i64} {
  func.func @_var_rnn_kernel(%arg0: memref<8x8x16xf32, #tpu.memory_space<vmem>>, %arg1: memref<8x1xi32, #tpu.memory_space<vmem>>, %arg2: memref<1xi32, #tpu.memory_space<smem>>, %arg3: memref<16x128xf32, #tpu.memory_space<vmem>>, %arg4: memref<1x128xf32, #tpu.memory_space<vmem>>, %arg5: memref<128x96xf32, #tpu.memory_space<vmem>>, %arg6: memref<1x96xf32, #tpu.memory_space<vmem>>, %arg7: memref<32x96xf32, #tpu.memory_space<vmem>>, %arg8: memref<1x96xf32, #tpu.memory_space<vmem>>, %arg9: memref<32x8xf32, #tpu.memory_space<vmem>>, %arg10: memref<1x8xf32, #tpu.memory_space<vmem>>, %arg11: memref<8x128xf32, #tpu.memory_space<vmem>>, %arg12: memref<1x128xf32, #tpu.memory_space<vmem>>, %arg13: memref<8x128xf32, #tpu.memory_space<vmem>>, %arg14: memref<8x8x96xf32, #tpu.memory_space<vmem>>) attributes {dimension_semantics = [], scalar_prefetch = 0 : i64, scratch_operands = 1 : i64, tpu.core_type = #tpu.core_type<tc>} {
    %c0 = arith.constant 0 : index
    %c0_0 = arith.constant 0 : index
    %c0_1 = arith.constant 0 : index
    %0 = vector.load %arg0[%c0, %c0_0, %c0_1] : memref<8x8x16xf32, #tpu.memory_space<vmem>>, vector<8x8x16xf32>
    %1 = vector.shape_cast %0 : vector<8x8x16xf32> to vector<64x16xf32>
    %c0_2 = arith.constant 0 : index
    %c0_3 = arith.constant 0 : index
    %2 = vector.load %arg3[%c0_2, %c0_3] : memref<16x128xf32, #tpu.memory_space<vmem>>, vector<16x128xf32>
    %cst = arith.constant dense<0.000000e+00> : vector<64x128xf32>
    %3 = tpu.matmul %1, %2, %cst {dimension_numbers = #tpu.dot_dimension_numbers<[1], [0], [0], [1], [0, 0, 1, 1], [], []>} : vector<64x16xf32>, vector<16x128xf32>, vector<64x128xf32> -> vector<64x128xf32>
    %c0_4 = arith.constant 0 : index
    %c0_5 = arith.constant 0 : index
    %4 = vector.load %arg4[%c0_4, %c0_5] : memref<1x128xf32, #tpu.memory_space<vmem>>, vector<1x128xf32>
    %5 = vector.broadcast %4 : vector<1x128xf32> to vector<64x128xf32>
    %6 = arith.addf %3, %5 : vector<64x128xf32>
    %7 = math.tanh %6 : vector<64x128xf32>
    %c0_6 = arith.constant 0 : index
    %c0_7 = arith.constant 0 : index
    %8 = vector.load %arg5[%c0_6, %c0_7] : memref<128x96xf32, #tpu.memory_space<vmem>>, vector<128x96xf32>
    %cst_8 = arith.constant dense<0.000000e+00> : vector<64x96xf32>
    %9 = tpu.matmul %7, %8, %cst_8 {dimension_numbers = #tpu.dot_dimension_numbers<[1], [0], [0], [1], [0, 0, 1, 1], [], []>} : vector<64x128xf32>, vector<128x96xf32>, vector<64x96xf32> -> vector<64x96xf32>
    %c0_9 = arith.constant 0 : index
    %c0_10 = arith.constant 0 : index
    %10 = vector.load %arg6[%c0_9, %c0_10] : memref<1x96xf32, #tpu.memory_space<vmem>>, vector<1x96xf32>
    %11 = vector.broadcast %10 : vector<1x96xf32> to vector<64x96xf32>
    %12 = arith.addf %9, %11 : vector<64x96xf32>
    %13 = vector.shape_cast %12 : vector<64x96xf32> to vector<8x8x96xf32>
    %c0_11 = arith.constant 0 : index
    %c0_12 = arith.constant 0 : index
    %c0_13 = arith.constant 0 : index
    %14 = vector.load %arg14[%c0_11, %c0_12, %c0_13] : memref<8x8x96xf32, #tpu.memory_space<vmem>>, vector<8x8x96xf32>
    tpu.vector_store %arg14[%c0_11, %c0_12, %c0_13], %13 {strides = array<i32>} : memref<8x8x96xf32, #tpu.memory_space<vmem>>, vector<8x8x96xf32>,
    %c0_14 = arith.constant 0 : index
    %c0_15 = arith.constant 0 : index
    %15 = vector.load %arg1[%c0_14, %c0_15] : memref<8x1xi32, #tpu.memory_space<vmem>>, vector<8x1xi32>
    %cst_16 = arith.constant 0.000000e+00 : f32
    %16 = vector.broadcast %cst_16 : f32 to vector<8x32xf32>
    %c0_i32 = arith.constant 0 : i32
    %17 = arith.index_cast %c0_i32 : i32 to index
    %c0_17 = arith.constant 0 : index
    %c0_18 = arith.constant 0 : index
    %18 = vector.load %arg14[%17, %c0_17, %c0_18] : memref<8x8x96xf32, #tpu.memory_space<vmem>>, vector<1x8x96xf32>
    %19 = vector.shape_cast %18 : vector<1x8x96xf32> to vector<8x96xf32>
    %c0_19 = arith.constant 0 : index
    %c0_20 = arith.constant 0 : index
    %20 = vector.load %arg7[%c0_19, %c0_20] : memref<32x96xf32, #tpu.memory_space<vmem>>, vector<32x96xf32>
    %cst_21 = arith.constant dense<0.000000e+00> : vector<8x96xf32>
    %21 = tpu.matmul %16, %20, %cst_21 {dimension_numbers = #tpu.dot_dimension_numbers<[1], [0], [0], [1], [0, 0, 1, 1], [], []>} : vector<8x32xf32>, vector<32x96xf32>, vector<8x96xf32> -> vector<8x96xf32>
    %c0_22 = arith.constant 0 : index
    %c0_23 = arith.constant 0 : index
    %22 = vector.load %arg8[%c0_22, %c0_23] : memref<1x96xf32, #tpu.memory_space<vmem>>, vector<1x96xf32>
    %23 = vector.broadcast %22 : vector<1x96xf32> to vector<8x96xf32>
    %24 = arith.addf %21, %23 : vector<8x96xf32>
    %25 = arith.addf %19, %24 : vector<8x96xf32>
    %26 = vector.extract_strided_slice %25 {offsets = [0, 0], sizes = [8, 64], strides = [1, 1]} : vector<8x96xf32> to vector<8x64xf32>
    %27 = arith.negf %26 : vector<8x64xf32>
    %28 = math.exp %27 : vector<8x64xf32>
    %cst_24 = arith.constant 1.000000e+00 : f32
    %29 = vector.broadcast %cst_24 : f32 to vector<8x64xf32>
    %30 = arith.addf %29, %28 : vector<8x64xf32>
    %31 = arith.divf %29, %30 : vector<8x64xf32>
    %32 = vector.extract_strided_slice %31 {offsets = [0, 0], sizes = [8, 32], strides = [1, 1]} : vector<8x64xf32> to vector<8x32xf32>
    %33 = vector.extract_strided_slice %31 {offsets = [0, 32], sizes = [8, 32], strides = [1, 1]} : vector<8x64xf32> to vector<8x32xf32>
    %34 = vector.extract_strided_slice %19 {offsets = [0, 64], sizes = [8, 32], strides = [1, 1]} : vector<8x96xf32> to vector<8x32xf32>
    %35 = vector.extract_strided_slice %24 {offsets = [0, 64], sizes = [8, 32], strides = [1, 1]} : vector<8x96xf32> to vector<8x32xf32>
    %36 = arith.mulf %32, %35 : vector<8x32xf32>
    %37 = arith.addf %34, %36 : vector<8x32xf32>
    %38 = math.tanh %37 : vector<8x32xf32>
    %cst_25 = arith.constant 1.000000e+00 : f32
    %39 = vector.broadcast %cst_25 : f32 to vector<8x32xf32>
    %40 = arith.subf %39, %33 : vector<8x32xf32>
    %41 = arith.mulf %40, %38 : vector<8x32xf32>
    %42 = arith.mulf %33, %16 : vector<8x32xf32>
    %43 = arith.addf %41, %42 : vector<8x32xf32>
    %44 = vector.broadcast %c0_i32 : i32 to vector<8x1xi32>
    %45 = arith.cmpi sgt, %15, %44 : vector<8x1xi32>
    %46 = vector.shape_cast %45 : vector<8x1xi1> to vector<8x1xi1>
    %47 = vector.broadcast %46 : vector<8x1xi1> to vector<8x32xi1>
    %48 = arith.select %47, %43, %16 : vector<8x32xi1>, vector<8x32xf32>
    %c1_i32 = arith.constant 1 : i32
    %49 = arith.index_cast %c1_i32 : i32 to index
    %c0_26 = arith.constant 0 : index
    %c0_27 = arith.constant 0 : index
    %50 = vector.load %arg14[%49, %c0_26, %c0_27] : memref<8x8x96xf32, #tpu.memory_space<vmem>>, vector<1x8x96xf32>
    %51 = vector.shape_cast %50 : vector<1x8x96xf32> to vector<8x96xf32>
    %c0_28 = arith.constant 0 : index
    %c0_29 = arith.constant 0 : index
    %52 = vector.load %arg7[%c0_28, %c0_29] : memref<32x96xf32, #tpu.memory_space<vmem>>, vector<32x96xf32>
    %cst_30 = arith.constant dense<0.000000e+00> : vector<8x96xf32>
    %53 = tpu.matmul %48, %52, %cst_30 {dimension_numbers = #tpu.dot_dimension_numbers<[1], [0], [0], [1], [0, 0, 1, 1], [], []>} : vector<8x32xf32>, vector<32x96xf32>, vector<8x96xf32> -> vector<8x96xf32>
    %c0_31 = arith.constant 0 : index
    %c0_32 = arith.constant 0 : index
    %54 = vector.load %arg8[%c0_31, %c0_32] : memref<1x96xf32, #tpu.memory_space<vmem>>, vector<1x96xf32>
    %55 = vector.broadcast %54 : vector<1x96xf32> to vector<8x96xf32>
    %56 = arith.addf %53, %55 : vector<8x96xf32>
    %57 = arith.addf %51, %56 : vector<8x96xf32>
    %58 = vector.extract_strided_slice %57 {offsets = [0, 0], sizes = [8, 64], strides = [1, 1]} : vector<8x96xf32> to vector<8x64xf32>
    %59 = arith.negf %58 : vector<8x64xf32>
    %60 = math.exp %59 : vector<8x64xf32>
    %cst_33 = arith.constant 1.000000e+00 : f32
    %61 = vector.broadcast %cst_33 : f32 to vector<8x64xf32>
    %62 = arith.addf %61, %60 : vector<8x64xf32>
    %63 = arith.divf %61, %62 : vector<8x64xf32>
    %64 = vector.extract_strided_slice %63 {offsets = [0, 0], sizes = [8, 32], strides = [1, 1]} : vector<8x64xf32> to vector<8x32xf32>
    %65 = vector.extract_strided_slice %63 {offsets = [0, 32], sizes = [8, 32], strides = [1, 1]} : vector<8x64xf32> to vector<8x32xf32>
    %66 = vector.extract_strided_slice %51 {offsets = [0, 64], sizes = [8, 32], strides = [1, 1]} : vector<8x96xf32> to vector<8x32xf32>
    %67 = vector.extract_strided_slice %56 {offsets = [0, 64], sizes = [8, 32], strides = [1, 1]} : vector<8x96xf32> to vector<8x32xf32>
    %68 = arith.mulf %64, %67 : vector<8x32xf32>
    %69 = arith.addf %66, %68 : vector<8x32xf32>
    %70 = math.tanh %69 : vector<8x32xf32>
    %cst_34 = arith.constant 1.000000e+00 : f32
    %71 = vector.broadcast %cst_34 : f32 to vector<8x32xf32>
    %72 = arith.subf %71, %65 : vector<8x32xf32>
    %73 = arith.mulf %72, %70 : vector<8x32xf32>
    %74 = arith.mulf %65, %48 : vector<8x32xf32>
    %75 = arith.addf %73, %74 : vector<8x32xf32>
    %76 = vector.broadcast %c1_i32 : i32 to vector<8x1xi32>
    %77 = arith.cmpi sgt, %15, %76 : vector<8x1xi32>
    %78 = vector.shape_cast %77 : vector<8x1xi1> to vector<8x1xi1>
    %79 = vector.broadcast %78 : vector<8x1xi1> to vector<8x32xi1>
    %80 = arith.select %79, %75, %48 : vector<8x32xi1>, vector<8x32xf32>
    %c2_i32 = arith.constant 2 : i32
    %81 = arith.index_cast %c2_i32 : i32 to index
    %c0_35 = arith.constant 0 : index
    %c0_36 = arith.constant 0 : index
    %82 = vector.load %arg14[%81, %c0_35, %c0_36] : memref<8x8x96xf32, #tpu.memory_space<vmem>>, vector<1x8x96xf32>
    %83 = vector.shape_cast %82 : vector<1x8x96xf32> to vector<8x96xf32>
    %c0_37 = arith.constant 0 : index
    %c0_38 = arith.constant 0 : index
    %84 = vector.load %arg7[%c0_37, %c0_38] : memref<32x96xf32, #tpu.memory_space<vmem>>, vector<32x96xf32>
    %cst_39 = arith.constant dense<0.000000e+00> : vector<8x96xf32>
    %85 = tpu.matmul %80, %84, %cst_39 {dimension_numbers = #tpu.dot_dimension_numbers<[1], [0], [0], [1], [0, 0, 1, 1], [], []>} : vector<8x32xf32>, vector<32x96xf32>, vector<8x96xf32> -> vector<8x96xf32>
    %c0_40 = arith.constant 0 : index
    %c0_41 = arith.constant 0 : index
    %86 = vector.load %arg8[%c0_40, %c0_41] : memref<1x96xf32, #tpu.memory_space<vmem>>, vector<1x96xf32>
    %87 = vector.broadcast %86 : vector<1x96xf32> to vector<8x96xf32>
    %88 = arith.addf %85, %87 : vector<8x96xf32>
    %89 = arith.addf %83, %88 : vector<8x96xf32>
    %90 = vector.extract_strided_slice %89 {offsets = [0, 0], sizes = [8, 64], strides = [1, 1]} : vector<8x96xf32> to vector<8x64xf32>
    %91 = arith.negf %90 : vector<8x64xf32>
    %92 = math.exp %91 : vector<8x64xf32>
    %cst_42 = arith.constant 1.000000e+00 : f32
    %93 = vector.broadcast %cst_42 : f32 to vector<8x64xf32>
    %94 = arith.addf %93, %92 : vector<8x64xf32>
    %95 = arith.divf %93, %94 : vector<8x64xf32>
    %96 = vector.extract_strided_slice %95 {offsets = [0, 0], sizes = [8, 32], strides = [1, 1]} : vector<8x64xf32> to vector<8x32xf32>
    %97 = vector.extract_strided_slice %95 {offsets = [0, 32], sizes = [8, 32], strides = [1, 1]} : vector<8x64xf32> to vector<8x32xf32>
    %98 = vector.extract_strided_slice %83 {offsets = [0, 64], sizes = [8, 32], strides = [1, 1]} : vector<8x96xf32> to vector<8x32xf32>
    %99 = vector.extract_strided_slice %88 {offsets = [0, 64], sizes = [8, 32], strides = [1, 1]} : vector<8x96xf32> to vector<8x32xf32>
    %100 = arith.mulf %96, %99 : vector<8x32xf32>
    %101 = arith.addf %98, %100 : vector<8x32xf32>
    %102 = math.tanh %101 : vector<8x32xf32>
    %cst_43 = arith.constant 1.000000e+00 : f32
    %103 = vector.broadcast %cst_43 : f32 to vector<8x32xf32>
    %104 = arith.subf %103, %97 : vector<8x32xf32>
    %105 = arith.mulf %104, %102 : vector<8x32xf32>
    %106 = arith.mulf %97, %80 : vector<8x32xf32>
    %107 = arith.addf %105, %106 : vector<8x32xf32>
    %108 = vector.broadcast %c2_i32 : i32 to vector<8x1xi32>
    %109 = arith.cmpi sgt, %15, %108 : vector<8x1xi32>
    %110 = vector.shape_cast %109 : vector<8x1xi1> to vector<8x1xi1>
    %111 = vector.broadcast %110 : vector<8x1xi1> to vector<8x32xi1>
    %112 = arith.select %111, %107, %80 : vector<8x32xi1>, vector<8x32xf32>
    %c3_i32 = arith.constant 3 : i32
    %113 = arith.index_cast %c3_i32 : i32 to index
    %c0_44 = arith.constant 0 : index
    %c0_45 = arith.constant 0 : index
    %114 = vector.load %arg14[%113, %c0_44, %c0_45] : memref<8x8x96xf32, #tpu.memory_space<vmem>>, vector<1x8x96xf32>
    %115 = vector.shape_cast %114 : vector<1x8x96xf32> to vector<8x96xf32>
    %c0_46 = arith.constant 0 : index
    %c0_47 = arith.constant 0 : index
    %116 = vector.load %arg7[%c0_46, %c0_47] : memref<32x96xf32, #tpu.memory_space<vmem>>, vector<32x96xf32>
    %cst_48 = arith.constant dense<0.000000e+00> : vector<8x96xf32>
    %117 = tpu.matmul %112, %116, %cst_48 {dimension_numbers = #tpu.dot_dimension_numbers<[1], [0], [0], [1], [0, 0, 1, 1], [], []>} : vector<8x32xf32>, vector<32x96xf32>, vector<8x96xf32> -> vector<8x96xf32>
    %c0_49 = arith.constant 0 : index
    %c0_50 = arith.constant 0 : index
    %118 = vector.load %arg8[%c0_49, %c0_50] : memref<1x96xf32, #tpu.memory_space<vmem>>, vector<1x96xf32>
    %119 = vector.broadcast %118 : vector<1x96xf32> to vector<8x96xf32>
    %120 = arith.addf %117, %119 : vector<8x96xf32>
    %121 = arith.addf %115, %120 : vector<8x96xf32>
    %122 = vector.extract_strided_slice %121 {offsets = [0, 0], sizes = [8, 64], strides = [1, 1]} : vector<8x96xf32> to vector<8x64xf32>
    %123 = arith.negf %122 : vector<8x64xf32>
    %124 = math.exp %123 : vector<8x64xf32>
    %cst_51 = arith.constant 1.000000e+00 : f32
    %125 = vector.broadcast %cst_51 : f32 to vector<8x64xf32>
    %126 = arith.addf %125, %124 : vector<8x64xf32>
    %127 = arith.divf %125, %126 : vector<8x64xf32>
    %128 = vector.extract_strided_slice %127 {offsets = [0, 0], sizes = [8, 32], strides = [1, 1]} : vector<8x64xf32> to vector<8x32xf32>
    %129 = vector.extract_strided_slice %127 {offsets = [0, 32], sizes = [8, 32], strides = [1, 1]} : vector<8x64xf32> to vector<8x32xf32>
    %130 = vector.extract_strided_slice %115 {offsets = [0, 64], sizes = [8, 32], strides = [1, 1]} : vector<8x96xf32> to vector<8x32xf32>
    %131 = vector.extract_strided_slice %120 {offsets = [0, 64], sizes = [8, 32], strides = [1, 1]} : vector<8x96xf32> to vector<8x32xf32>
    %132 = arith.mulf %128, %131 : vector<8x32xf32>
    %133 = arith.addf %130, %132 : vector<8x32xf32>
    %134 = math.tanh %133 : vector<8x32xf32>
    %cst_52 = arith.constant 1.000000e+00 : f32
    %135 = vector.broadcast %cst_52 : f32 to vector<8x32xf32>
    %136 = arith.subf %135, %129 : vector<8x32xf32>
    %137 = arith.mulf %136, %134 : vector<8x32xf32>
    %138 = arith.mulf %129, %112 : vector<8x32xf32>
    %139 = arith.addf %137, %138 : vector<8x32xf32>
    %140 = vector.broadcast %c3_i32 : i32 to vector<8x1xi32>
    %141 = arith.cmpi sgt, %15, %140 : vector<8x1xi32>
    %142 = vector.shape_cast %141 : vector<8x1xi1> to vector<8x1xi1>
    %143 = vector.broadcast %142 : vector<8x1xi1> to vector<8x32xi1>
    %144 = arith.select %143, %139, %112 : vector<8x32xi1>, vector<8x32xf32>
    %c4_i32 = arith.constant 4 : i32
    %145 = arith.index_cast %c4_i32 : i32 to index
    %c0_53 = arith.constant 0 : index
    %c0_54 = arith.constant 0 : index
    %146 = vector.load %arg14[%145, %c0_53, %c0_54] : memref<8x8x96xf32, #tpu.memory_space<vmem>>, vector<1x8x96xf32>
    %147 = vector.shape_cast %146 : vector<1x8x96xf32> to vector<8x96xf32>
    %c0_55 = arith.constant 0 : index
    %c0_56 = arith.constant 0 : index
    %148 = vector.load %arg7[%c0_55, %c0_56] : memref<32x96xf32, #tpu.memory_space<vmem>>, vector<32x96xf32>
    %cst_57 = arith.constant dense<0.000000e+00> : vector<8x96xf32>
    %149 = tpu.matmul %144, %148, %cst_57 {dimension_numbers = #tpu.dot_dimension_numbers<[1], [0], [0], [1], [0, 0, 1, 1], [], []>} : vector<8x32xf32>, vector<32x96xf32>, vector<8x96xf32> -> vector<8x96xf32>
    %c0_58 = arith.constant 0 : index
    %c0_59 = arith.constant 0 : index
    %150 = vector.load %arg8[%c0_58, %c0_59] : memref<1x96xf32, #tpu.memory_space<vmem>>, vector<1x96xf32>
    %151 = vector.broadcast %150 : vector<1x96xf32> to vector<8x96xf32>
    %152 = arith.addf %149, %151 : vector<8x96xf32>
    %153 = arith.addf %147, %152 : vector<8x96xf32>
    %154 = vector.extract_strided_slice %153 {offsets = [0, 0], sizes = [8, 64], strides = [1, 1]} : vector<8x96xf32> to vector<8x64xf32>
    %155 = arith.negf %154 : vector<8x64xf32>
    %156 = math.exp %155 : vector<8x64xf32>
    %cst_60 = arith.constant 1.000000e+00 : f32
    %157 = vector.broadcast %cst_60 : f32 to vector<8x64xf32>
    %158 = arith.addf %157, %156 : vector<8x64xf32>
    %159 = arith.divf %157, %158 : vector<8x64xf32>
    %160 = vector.extract_strided_slice %159 {offsets = [0, 0], sizes = [8, 32], strides = [1, 1]} : vector<8x64xf32> to vector<8x32xf32>
    %161 = vector.extract_strided_slice %159 {offsets = [0, 32], sizes = [8, 32], strides = [1, 1]} : vector<8x64xf32> to vector<8x32xf32>
    %162 = vector.extract_strided_slice %147 {offsets = [0, 64], sizes = [8, 32], strides = [1, 1]} : vector<8x96xf32> to vector<8x32xf32>
    %163 = vector.extract_strided_slice %152 {offsets = [0, 64], sizes = [8, 32], strides = [1, 1]} : vector<8x96xf32> to vector<8x32xf32>
    %164 = arith.mulf %160, %163 : vector<8x32xf32>
    %165 = arith.addf %162, %164 : vector<8x32xf32>
    %166 = math.tanh %165 : vector<8x32xf32>
    %cst_61 = arith.constant 1.000000e+00 : f32
    %167 = vector.broadcast %cst_61 : f32 to vector<8x32xf32>
    %168 = arith.subf %167, %161 : vector<8x32xf32>
    %169 = arith.mulf %168, %166 : vector<8x32xf32>
    %170 = arith.mulf %161, %144 : vector<8x32xf32>
    %171 = arith.addf %169, %170 : vector<8x32xf32>
    %172 = vector.broadcast %c4_i32 : i32 to vector<8x1xi32>
    %173 = arith.cmpi sgt, %15, %172 : vector<8x1xi32>
    %174 = vector.shape_cast %173 : vector<8x1xi1> to vector<8x1xi1>
    %175 = vector.broadcast %174 : vector<8x1xi1> to vector<8x32xi1>
    %176 = arith.select %175, %171, %144 : vector<8x32xi1>, vector<8x32xf32>
    %c5_i32 = arith.constant 5 : i32
    %177 = arith.index_cast %c5_i32 : i32 to index
    %c0_62 = arith.constant 0 : index
    %c0_63 = arith.constant 0 : index
    %178 = vector.load %arg14[%177, %c0_62, %c0_63] : memref<8x8x96xf32, #tpu.memory_space<vmem>>, vector<1x8x96xf32>
    %179 = vector.shape_cast %178 : vector<1x8x96xf32> to vector<8x96xf32>
    %c0_64 = arith.constant 0 : index
    %c0_65 = arith.constant 0 : index
    %180 = vector.load %arg7[%c0_64, %c0_65] : memref<32x96xf32, #tpu.memory_space<vmem>>, vector<32x96xf32>
    %cst_66 = arith.constant dense<0.000000e+00> : vector<8x96xf32>
    %181 = tpu.matmul %176, %180, %cst_66 {dimension_numbers = #tpu.dot_dimension_numbers<[1], [0], [0], [1], [0, 0, 1, 1], [], []>} : vector<8x32xf32>, vector<32x96xf32>, vector<8x96xf32> -> vector<8x96xf32>
    %c0_67 = arith.constant 0 : index
    %c0_68 = arith.constant 0 : index
    %182 = vector.load %arg8[%c0_67, %c0_68] : memref<1x96xf32, #tpu.memory_space<vmem>>, vector<1x96xf32>
    %183 = vector.broadcast %182 : vector<1x96xf32> to vector<8x96xf32>
    %184 = arith.addf %181, %183 : vector<8x96xf32>
    %185 = arith.addf %179, %184 : vector<8x96xf32>
    %186 = vector.extract_strided_slice %185 {offsets = [0, 0], sizes = [8, 64], strides = [1, 1]} : vector<8x96xf32> to vector<8x64xf32>
    %187 = arith.negf %186 : vector<8x64xf32>
    %188 = math.exp %187 : vector<8x64xf32>
    %cst_69 = arith.constant 1.000000e+00 : f32
    %189 = vector.broadcast %cst_69 : f32 to vector<8x64xf32>
    %190 = arith.addf %189, %188 : vector<8x64xf32>
    %191 = arith.divf %189, %190 : vector<8x64xf32>
    %192 = vector.extract_strided_slice %191 {offsets = [0, 0], sizes = [8, 32], strides = [1, 1]} : vector<8x64xf32> to vector<8x32xf32>
    %193 = vector.extract_strided_slice %191 {offsets = [0, 32], sizes = [8, 32], strides = [1, 1]} : vector<8x64xf32> to vector<8x32xf32>
    %194 = vector.extract_strided_slice %179 {offsets = [0, 64], sizes = [8, 32], strides = [1, 1]} : vector<8x96xf32> to vector<8x32xf32>
    %195 = vector.extract_strided_slice %184 {offsets = [0, 64], sizes = [8, 32], strides = [1, 1]} : vector<8x96xf32> to vector<8x32xf32>
    %196 = arith.mulf %192, %195 : vector<8x32xf32>
    %197 = arith.addf %194, %196 : vector<8x32xf32>
    %198 = math.tanh %197 : vector<8x32xf32>
    %cst_70 = arith.constant 1.000000e+00 : f32
    %199 = vector.broadcast %cst_70 : f32 to vector<8x32xf32>
    %200 = arith.subf %199, %193 : vector<8x32xf32>
    %201 = arith.mulf %200, %198 : vector<8x32xf32>
    %202 = arith.mulf %193, %176 : vector<8x32xf32>
    %203 = arith.addf %201, %202 : vector<8x32xf32>
    %204 = vector.broadcast %c5_i32 : i32 to vector<8x1xi32>
    %205 = arith.cmpi sgt, %15, %204 : vector<8x1xi32>
    %206 = vector.shape_cast %205 : vector<8x1xi1> to vector<8x1xi1>
    %207 = vector.broadcast %206 : vector<8x1xi1> to vector<8x32xi1>
    %208 = arith.select %207, %203, %176 : vector<8x32xi1>, vector<8x32xf32>
    %c6_i32 = arith.constant 6 : i32
    %209 = arith.index_cast %c6_i32 : i32 to index
    %c0_71 = arith.constant 0 : index
    %c0_72 = arith.constant 0 : index
    %210 = vector.load %arg14[%209, %c0_71, %c0_72] : memref<8x8x96xf32, #tpu.memory_space<vmem>>, vector<1x8x96xf32>
    %211 = vector.shape_cast %210 : vector<1x8x96xf32> to vector<8x96xf32>
    %c0_73 = arith.constant 0 : index
    %c0_74 = arith.constant 0 : index
    %212 = vector.load %arg7[%c0_73, %c0_74] : memref<32x96xf32, #tpu.memory_space<vmem>>, vector<32x96xf32>
    %cst_75 = arith.constant dense<0.000000e+00> : vector<8x96xf32>
    %213 = tpu.matmul %208, %212, %cst_75 {dimension_numbers = #tpu.dot_dimension_numbers<[1], [0], [0], [1], [0, 0, 1, 1], [], []>} : vector<8x32xf32>, vector<32x96xf32>, vector<8x96xf32> -> vector<8x96xf32>
    %c0_76 = arith.constant 0 : index
    %c0_77 = arith.constant 0 : index
    %214 = vector.load %arg8[%c0_76, %c0_77] : memref<1x96xf32, #tpu.memory_space<vmem>>, vector<1x96xf32>
    %215 = vector.broadcast %214 : vector<1x96xf32> to vector<8x96xf32>
    %216 = arith.addf %213, %215 : vector<8x96xf32>
    %217 = arith.addf %211, %216 : vector<8x96xf32>
    %218 = vector.extract_strided_slice %217 {offsets = [0, 0], sizes = [8, 64], strides = [1, 1]} : vector<8x96xf32> to vector<8x64xf32>
    %219 = arith.negf %218 : vector<8x64xf32>
    %220 = math.exp %219 : vector<8x64xf32>
    %cst_78 = arith.constant 1.000000e+00 : f32
    %221 = vector.broadcast %cst_78 : f32 to vector<8x64xf32>
    %222 = arith.addf %221, %220 : vector<8x64xf32>
    %223 = arith.divf %221, %222 : vector<8x64xf32>
    %224 = vector.extract_strided_slice %223 {offsets = [0, 0], sizes = [8, 32], strides = [1, 1]} : vector<8x64xf32> to vector<8x32xf32>
    %225 = vector.extract_strided_slice %223 {offsets = [0, 32], sizes = [8, 32], strides = [1, 1]} : vector<8x64xf32> to vector<8x32xf32>
    %226 = vector.extract_strided_slice %211 {offsets = [0, 64], sizes = [8, 32], strides = [1, 1]} : vector<8x96xf32> to vector<8x32xf32>
    %227 = vector.extract_strided_slice %216 {offsets = [0, 64], sizes = [8, 32], strides = [1, 1]} : vector<8x96xf32> to vector<8x32xf32>
    %228 = arith.mulf %224, %227 : vector<8x32xf32>
    %229 = arith.addf %226, %228 : vector<8x32xf32>
    %230 = math.tanh %229 : vector<8x32xf32>
    %cst_79 = arith.constant 1.000000e+00 : f32
    %231 = vector.broadcast %cst_79 : f32 to vector<8x32xf32>
    %232 = arith.subf %231, %225 : vector<8x32xf32>
    %233 = arith.mulf %232, %230 : vector<8x32xf32>
    %234 = arith.mulf %225, %208 : vector<8x32xf32>
    %235 = arith.addf %233, %234 : vector<8x32xf32>
    %236 = vector.broadcast %c6_i32 : i32 to vector<8x1xi32>
    %237 = arith.cmpi sgt, %15, %236 : vector<8x1xi32>
    %238 = vector.shape_cast %237 : vector<8x1xi1> to vector<8x1xi1>
    %239 = vector.broadcast %238 : vector<8x1xi1> to vector<8x32xi1>
    %240 = arith.select %239, %235, %208 : vector<8x32xi1>, vector<8x32xf32>
    %c7_i32 = arith.constant 7 : i32
    %241 = arith.index_cast %c7_i32 : i32 to index
    %c0_80 = arith.constant 0 : index
    %c0_81 = arith.constant 0 : index
    %242 = vector.load %arg14[%241, %c0_80, %c0_81] : memref<8x8x96xf32, #tpu.memory_space<vmem>>, vector<1x8x96xf32>
    %243 = vector.shape_cast %242 : vector<1x8x96xf32> to vector<8x96xf32>
    %c0_82 = arith.constant 0 : index
    %c0_83 = arith.constant 0 : index
    %244 = vector.load %arg7[%c0_82, %c0_83] : memref<32x96xf32, #tpu.memory_space<vmem>>, vector<32x96xf32>
    %cst_84 = arith.constant dense<0.000000e+00> : vector<8x96xf32>
    %245 = tpu.matmul %240, %244, %cst_84 {dimension_numbers = #tpu.dot_dimension_numbers<[1], [0], [0], [1], [0, 0, 1, 1], [], []>} : vector<8x32xf32>, vector<32x96xf32>, vector<8x96xf32> -> vector<8x96xf32>
    %c0_85 = arith.constant 0 : index
    %c0_86 = arith.constant 0 : index
    %246 = vector.load %arg8[%c0_85, %c0_86] : memref<1x96xf32, #tpu.memory_space<vmem>>, vector<1x96xf32>
    %247 = vector.broadcast %246 : vector<1x96xf32> to vector<8x96xf32>
    %248 = arith.addf %245, %247 : vector<8x96xf32>
    %249 = arith.addf %243, %248 : vector<8x96xf32>
    %250 = vector.extract_strided_slice %249 {offsets = [0, 0], sizes = [8, 64], strides = [1, 1]} : vector<8x96xf32> to vector<8x64xf32>
    %251 = arith.negf %250 : vector<8x64xf32>
    %252 = math.exp %251 : vector<8x64xf32>
    %cst_87 = arith.constant 1.000000e+00 : f32
    %253 = vector.broadcast %cst_87 : f32 to vector<8x64xf32>
    %254 = arith.addf %253, %252 : vector<8x64xf32>
    %255 = arith.divf %253, %254 : vector<8x64xf32>
    %256 = vector.extract_strided_slice %255 {offsets = [0, 0], sizes = [8, 32], strides = [1, 1]} : vector<8x64xf32> to vector<8x32xf32>
    %257 = vector.extract_strided_slice %255 {offsets = [0, 32], sizes = [8, 32], strides = [1, 1]} : vector<8x64xf32> to vector<8x32xf32>
    %258 = vector.extract_strided_slice %243 {offsets = [0, 64], sizes = [8, 32], strides = [1, 1]} : vector<8x96xf32> to vector<8x32xf32>
    %259 = vector.extract_strided_slice %248 {offsets = [0, 64], sizes = [8, 32], strides = [1, 1]} : vector<8x96xf32> to vector<8x32xf32>
    %260 = arith.mulf %256, %259 : vector<8x32xf32>
    %261 = arith.addf %258, %260 : vector<8x32xf32>
    %262 = math.tanh %261 : vector<8x32xf32>
    %cst_88 = arith.constant 1.000000e+00 : f32
    %263 = vector.broadcast %cst_88 : f32 to vector<8x32xf32>
    %264 = arith.subf %263, %257 : vector<8x32xf32>
    %265 = arith.mulf %264, %262 : vector<8x32xf32>
    %266 = arith.mulf %257, %240 : vector<8x32xf32>
    %267 = arith.addf %265, %266 : vector<8x32xf32>
    %268 = vector.broadcast %c7_i32 : i32 to vector<8x1xi32>
    %269 = arith.cmpi sgt, %15, %268 : vector<8x1xi32>
    %270 = vector.shape_cast %269 : vector<8x1xi1> to vector<8x1xi1>
    %271 = vector.broadcast %270 : vector<8x1xi1> to vector<8x32xi1>
    %272 = arith.select %271, %267, %240 : vector<8x32xi1>, vector<8x32xf32>
    %c8_i32 = arith.constant 8 : i32
    %c0_89 = arith.constant 0 : index
    %273 = memref.load %arg2[%c0_89] : memref<1xi32, #tpu.memory_space<smem>>
    %274 = vector.broadcast %273 : i32 to vector<8x1xi32>
    %275 = arith.cmpi sge, %15, %274 : vector<8x1xi32>
    %cst_90 = arith.constant 0.000000e+00 : f32
    %276 = vector.shape_cast %275 : vector<8x1xi1> to vector<8x1xi1>
    %277 = vector.broadcast %276 : vector<8x1xi1> to vector<8x32xi1>
    %278 = vector.broadcast %cst_90 : f32 to vector<8x32xf32>
    %279 = arith.select %277, %272, %278 : vector<8x32xi1>, vector<8x32xf32>
    %280 = math.tanh %279 : vector<8x32xf32>
    %c0_91 = arith.constant 0 : index
    %c0_92 = arith.constant 0 : index
    %281 = vector.load %arg9[%c0_91, %c0_92] : memref<32x8xf32, #tpu.memory_space<vmem>>, vector<32x8xf32>
    %cst_93 = arith.constant dense<0.000000e+00> : vector<8x8xf32>
    %282 = tpu.matmul %280, %281, %cst_93 {dimension_numbers = #tpu.dot_dimension_numbers<[1], [0], [0], [1], [0, 0, 1, 1], [], []>} : vector<8x32xf32>, vector<32x8xf32>, vector<8x8xf32> -> vector<8x8xf32>
    %c0_94 = arith.constant 0 : index
    %c0_95 = arith.constant 0 : index
    %283 = vector.load %arg10[%c0_94, %c0_95] : memref<1x8xf32, #tpu.memory_space<vmem>>, vector<1x8xf32>
    %284 = vector.broadcast %283 : vector<1x8xf32> to vector<8x8xf32>
    %285 = arith.addf %282, %284 : vector<8x8xf32>
    %c0_96 = arith.constant 0 : index
    %c0_97 = arith.constant 0 : index
    %286 = vector.load %arg11[%c0_96, %c0_97] : memref<8x128xf32, #tpu.memory_space<vmem>>, vector<8x128xf32>
    %cst_98 = arith.constant dense<0.000000e+00> : vector<8x128xf32>
    %287 = tpu.matmul %285, %286, %cst_98 {dimension_numbers = #tpu.dot_dimension_numbers<[1], [0], [0], [1], [0, 0, 1, 1], [], []>} : vector<8x8xf32>, vector<8x128xf32>, vector<8x128xf32> -> vector<8x128xf32>
    %c0_99 = arith.constant 0 : index
    %c0_100 = arith.constant 0 : index
    %288 = vector.load %arg12[%c0_99, %c0_100] : memref<1x128xf32, #tpu.memory_space<vmem>>, vector<1x128xf32>
    %289 = vector.broadcast %288 : vector<1x128xf32> to vector<8x128xf32>
    %290 = arith.addf %287, %289 : vector<8x128xf32>
    %c0_101 = arith.constant 0 : index
    %c0_102 = arith.constant 0 : index
    %291 = vector.load %arg13[%c0_101, %c0_102] : memref<8x128xf32, #tpu.memory_space<vmem>>, vector<8x128xf32>
    tpu.vector_store %arg13[%c0_101, %c0_102], %290 {strides = array<i32>} : memref<8x128xf32, #tpu.memory_space<vmem>>, vector<8x128xf32>,
    return
  }
}

</mosaic_0001>

<llo_original>
// kernel: tpu_custom_call.1
$region0: #{tpu_custom_call.1}
  #allocation0 [shape = 'u32[]', space=smem, size = 0x4, offset = 0x4, fixed_abs, tag = 'smem constant byte address 0x4 - core index']
  #allocation1 [shape = 'u32[144,128]{1,0:T(1,128)}', space=vmem, size = 0x12000, scoped, tag = 'internal scratch']
  #allocation2 [shape = 'f32[8,8,96]{2,1,0:T(8,128)}', space=vmem, size = 0x8000, scoped, tag = 'scratch operand']
  #allocation3 [shape = 's32[1]{0:T(128)S(6)}', space=smem, size = 0x200, scoped, tag = 'scoped memory for tpu_custom_call.1']
  %s0 = inlined_call_operand.vmem [shape: f32[8,8,16], index: 0, kind: input, shape index: {}]
  %s1 = inlined_call_operand.vmem [shape: s32[8,1], index: 1, kind: input, shape index: {}]
  %s2 = inlined_call_operand.<no memory space> [shape: s32[1], index: 2, kind: input, shape index: {}]
  %s3 = inlined_call_operand.vmem [shape: f32[16,128], index: 3, kind: input, shape index: {}]
  %s4 = inlined_call_operand.vmem [shape: f32[1,128], index: 4, kind: input, shape index: {}]
  %s5 = inlined_call_operand.vmem [shape: f32[128,96], index: 5, kind: input, shape index: {}]
  %s6 = inlined_call_operand.vmem [shape: f32[1,96], index: 6, kind: input, shape index: {}]
  %s7 = inlined_call_operand.vmem [shape: f32[32,96], index: 7, kind: input, shape index: {}]
  %s8 = inlined_call_operand.vmem [shape: f32[1,96], index: 8, kind: input, shape index: {}]
  %s9 = inlined_call_operand.vmem [shape: f32[32,8], index: 9, kind: input, shape index: {}]
  %s10 = inlined_call_operand.vmem [shape: f32[1,8], index: 10, kind: input, shape index: {}]
  %s11 = inlined_call_operand.vmem [shape: f32[8,128], index: 11, kind: input, shape index: {}]
  %s12 = inlined_call_operand.vmem [shape: f32[1,128], index: 12, kind: input, shape index: {}]
  %s13 = inlined_call_operand.hbm [shape: f32[8,128], index: 13, kind: output, shape index: {}]
  %s14 = sld [smem:[#allocation0]]
  $region62: #{tpu_custom_call.1} parent=0
    _
  %s16 = ssub.s32 1, %s14
  %s17 = scalar_select 0, %s16, %s14
  %18 = sst [smem:[#allocation3]] %s2
  $region1: #{tpu_custom_call.1} parent=0
    #allocation4 [shape = 'u8[4096]{0}', space=vmem, size = 0x1000, scoped, tag = 'output window, operand 0, single buffered']
    #allocation5 [shape = 's32[1]{0}', space=sflag, size = 0x4, scoped, tag = 'scoped memory for tpu_custom_call.1']
    %19 = vsyncpa [#allocation5], 0
    // Predicated region
    $region2: #{tpu_custom_call.1} parent=1 // pred_check
      _
    $region3: #{tpu_custom_call.1} parent=1 // pred_check_branch
      %21 = sbr.rel (0) target = $region5
    $region4: #{tpu_custom_call.1} parent=1 // pred_region
      _
    $region5: #{tpu_custom_call.1} parent=1 // pred_fallthru
      _
    // Predicated region
    $region6: #{tpu_custom_call.1} parent=1 // pred_check
      _
    $region7: #{tpu_custom_call.1} parent=1 // pred_check_branch
      %23 = sbr.rel (0) target = $region9
    $region8: #{tpu_custom_call.1} parent=1 // pred_region
      _
    $region9: #{tpu_custom_call.1} parent=1 // pred_fallthru
      _
    // Predicated region
    $region10: #{tpu_custom_call.1} parent=1 // pred_check
      _
    $region11: #{tpu_custom_call.1} parent=1 // pred_check_branch
      %25 = sbr.rel (0) target = $region13
    $region12: #{tpu_custom_call.1} parent=1 // pred_region
      _
    $region13: #{tpu_custom_call.1} parent=1 // pred_fallthru
      _
    // Predicated region
    $region14: #{tpu_custom_call.1} parent=1 // pred_check
      _
    $region15: #{tpu_custom_call.1} parent=1 // pred_check_branch
      %27 = sbr.rel (0) target = $region17
    $region16: #{tpu_custom_call.1} parent=1 // pred_region
      _
    $region17: #{tpu_custom_call.1} parent=1 // pred_fallthru
      _
    // Predicated region
    $region18: #{tpu_custom_call.1} parent=1 // pred_check
      _
    $region19: #{tpu_custom_call.1} parent=1 // pred_check_branch
      %29 = sbr.rel (0) target = $region21
    $region20: #{tpu_custom_call.1} parent=1 // pred_region
      _
    $region21: #{tpu_custom_call.1} parent=1 // pred_fallthru
      _
    // Predicated region
    $region22: #{tpu_custom_call.1} parent=1 // pred_check
      _
    $region23: #{tpu_custom_call.1} parent=1 // pred_check_branch
      %31 = sbr.rel (0) target = $region25
    $region24: #{tpu_custom_call.1} parent=1 // pred_region
      _
    $region25: #{tpu_custom_call.1} parent=1 // pred_fallthru
      _
    // Predicated region
    $region26: #{tpu_custom_call.1} parent=1 // pred_check
      _
    $region27: #{tpu_custom_call.1} parent=1 // pred_check_branch
      %33 = sbr.rel (0) target = $region29
    $region28: #{tpu_custom_call.1} parent=1 // pred_region
      _
    $region29: #{tpu_custom_call.1} parent=1 // pred_fallthru
      _
    // Predicated region
    $region30: #{tpu_custom_call.1} parent=1 // pred_check
      _
    $region31: #{tpu_custom_call.1} parent=1 // pred_check_branch
      %35 = sbr.rel (0) target = $region33
    $region32: #{tpu_custom_call.1} parent=1 // pred_region
      _
    $region33: #{tpu_custom_call.1} parent=1 // pred_fallthru
      _
    // Predicated region
    $region34: #{tpu_custom_call.1} parent=1 // pred_check
      _
    $region35: #{tpu_custom_call.1} parent=1 // pred_check_branch
      %37 = sbr.rel (0) target = $region37
    $region36: #{tpu_custom_call.1} parent=1 // pred_region
      _
    $region37: #{tpu_custom_call.1} parent=1 // pred_fallthru
      _
    // Predicated region
    $region38: #{tpu_custom_call.1} parent=1 // pred_check
      _
    $region39: #{tpu_custom_call.1} parent=1 // pred_check_branch
      %39 = sbr.rel (0) target = $region41
    $region40: #{tpu_custom_call.1} parent=1 // pred_region
      _
    $region41: #{tpu_custom_call.1} parent=1 // pred_fallthru
      _
    // Predicated region
    $region42: #{tpu_custom_call.1} parent=1 // pred_check
      _
    $region43: #{tpu_custom_call.1} parent=1 // pred_check_branch
      %41 = sbr.rel (0) target = $region45
    $region44: #{tpu_custom_call.1} parent=1 // pred_region
      _
    $region45: #{tpu_custom_call.1} parent=1 // pred_fallthru
      _
    // Predicated region
    $region46: #{tpu_custom_call.1} parent=1 // pred_check
      _
    $region47: #{tpu_custom_call.1} parent=1 // pred_check_branch
      %43 = sbr.rel (0) target = $region49
    $region48: #{tpu_custom_call.1} parent=1 // pred_region
      _
    $region49: #{tpu_custom_call.1} parent=1 // pred_fallthru
      _
    // Predicated region
    $region50: #{tpu_custom_call.1} parent=1 // pred_check
      _
    $region51: #{tpu_custom_call.1} parent=1 // pred_check_branch
      %45 = sbr.rel (0) target = $region53
    $region52: #{tpu_custom_call.1} parent=1 // pred_region
      _
    $region53: #{tpu_custom_call.1} parent=1 // pred_fallthru
      _
    %v46 = vld [vmem:[%s0] sm:$0xff]
    %v47 = vld [vmem:[%s0 + $0x8] sm:$0xff]
    %v48 = vld [vmem:[%s0 + $0x10] sm:$0xff]
    %v49 = vld [vmem:[%s0 + $0x18] sm:$0xff]
    %v50 = vld [vmem:[%s0 + $0x20] sm:$0xff]
    %v51 = vld [vmem:[%s0 + $0x28] sm:$0xff]
    %v52 = vld [vmem:[%s0 + $0x30] sm:$0xff]
    %v53 = vld [vmem:[%s0 + $0x38] sm:$0xff]
    %v54 = vld [vmem:[%s3] sm:$0xff]
    %v55 = vld [vmem:[%s3 + $0x8] sm:$0xff]
    %v56 = vld [vmem:[%s4] sm:$0x1]
    %v58 = vlaneseq
    %v59 = vshrl.u32 %v58, 7
    %v60 = vsub.s32 0, %v59
    %v61 = vrot.slane %v56, %v60
    %vm63 = vcmask 130048
    %v65 = vsel %vm63, %v46, 0
    %v68 = vsel %vm63, %v47, 0
    %v71 = vsel %vm63, %v48, 0
    %v74 = vsel %vm63, %v49, 0
    %v77 = vsel %vm63, %v50, 0
    %v80 = vsel %vm63, %v51, 0
    %v83 = vsel %vm63, %v52, 0
    %v86 = vsel %vm63, %v53, 0
    %88 = vmatprep.subr.mxu0 0.0
    %89 = vmatpush1.msra.mxu0 0.0
    %90 = vmatprep.subr.mxu0 0.0
    %91 = vmatpush1.msra.mxu0 0.0
    %92 = vmatprep.subr.mxu0 0.0
    %93 = vmatpush1.msra.mxu0 0.0
    %94 = vmatprep.subr.mxu0 0.0
    %95 = vmatpush1.msra.mxu0 0.0
    %96 = vmatprep.subr.mxu0 0.0
    %97 = vmatpush1.msra.mxu0 0.0
    %98 = vmatprep.subr.mxu0 0.0
    %99 = vmatpush1.msra.mxu0 0.0
    %100 = vmatprep.subr.mxu0 0.0
    %101 = vmatpush1.msra.mxu0 0.0
    %102 = vmatprep.subr.mxu0 0.0
    %103 = vmatpush1.msra.mxu0 0.0
    %104 = vmatprep.subr.mxu0 0.0
    %105 = vmatpush1.msra.mxu0 0.0
    %106 = vmatprep.subr.mxu0 0.0
    %107 = vmatpush1.msra.mxu0 0.0
    %108 = vmatprep.subr.mxu0 0.0
    %109 = vmatpush1.msra.mxu0 0.0
    %110 = vmatprep.subr.mxu0 0.0
    %111 = vmatpush1.msra.mxu0 0.0
    %112 = vmatprep.subr.mxu0 0.0
    %113 = vmatpush1.msra.mxu0 0.0
    %114 = vmatprep.subr.mxu0 0.0
    %115 = vmatpush1.msra.mxu0 0.0
    %116 = vmatprep.subr.mxu0 0.0
    %117 = vmatpush1.msra.mxu0 %v55
    %118 = vmatprep.subr.mxu0 0.0
    %119 = vmatpush1.msra.mxu0 %v54
    %120 = vmatprep.subr.mxu0 0.0
    %121 = vmatpush2.msra.mxu0 0.0
    %122 = vmatprep.subr.mxu0 0.0
    %123 = vmatpush2.msra.mxu0 0.0
    %124 = vmatprep.subr.mxu0 0.0
    %125 = vmatpush2.msra.mxu0 0.0
    %126 = vmatprep.subr.mxu0 0.0
    %127 = vmatpush2.msra.mxu0 0.0
    %128 = vmatprep.subr.mxu0 0.0
    %129 = vmatpush2.msra.mxu0 0.0
    %130 = vmatprep.subr.mxu0 0.0
    %131 = vmatpush2.msra.mxu0 0.0
    %132 = vmatprep.subr.mxu0 0.0
    %133 = vmatpush2.msra.mxu0 0.0
    %134 = vmatprep.subr.mxu0 0.0
    %135 = vmatpush2.msra.mxu0 0.0
    %136 = vmatprep.subr.mxu0 0.0
    %137 = vmatpush2.msra.mxu0 0.0
    %138 = vmatprep.subr.mxu0 0.0
    %139 = vmatpush2.msra.mxu0 0.0
    %140 = vmatprep.subr.mxu0 0.0
    %141 = vmatpush2.msra.mxu0 0.0
    %142 = vmatprep.subr.mxu0 0.0
    %143 = vmatpush2.msra.mxu0 0.0
    %144 = vmatprep.subr.mxu0 0.0
    %145 = vmatpush2.msra.mxu0 0.0
    %146 = vmatprep.subr.mxu0 0.0
    %147 = vmatpush2.msra.mxu0 0.0
    %148 = vmatprep.subr.mxu0 0.0
    %149 = vmatpush2.msra.mxu0 0.0
    %150 = vmatprep.subr.mxu0 0.0
    %151 = vmatpush2.msra.mxu0 0.0
    %152 = vmatprep.mubr.f32.mxu0 0.0
    %153 = vmatmul.mubr.f32.gmra.mxu0 %v65
    %v154 = vpop.f32.mrf.mxu0
    %v155 = vadd.f32 %v61, %v154
    %v156 = vpop.f32.mrf.mxu0
    %157 = vmatprep.mubr.f32.mxu0 0.0
    %158 = vmatmul.mubr.f32.gmra.mxu0 %v68
    %v159 = vpop.f32.mrf.mxu0
    %v160 = vadd.f32 %v61, %v159
    %v161 = vpop.f32.mrf.mxu0
    %162 = vmatprep.mubr.f32.mxu0 0.0
    %163 = vmatmul.mubr.f32.gmra.mxu0 %v71
    %v164 = vpop.f32.mrf.mxu0
    %v165 = vadd.f32 %v61, %v164
    %v166 = vpop.f32.mrf.mxu0
    %167 = vmatprep.mubr.f32.mxu0 0.0
    %168 = vmatmul.mubr.f32.gmra.mxu0 %v74
    %v169 = vpop.f32.mrf.mxu0
    %v170 = vadd.f32 %v61, %v169
    %v171 = vpop.f32.mrf.mxu0
    %172 = vmatprep.mubr.f32.mxu0 0.0
    %173 = vmatmul.mubr.f32.gmra.mxu0 %v77
    %v174 = vpop.f32.mrf.mxu0
    %v175 = vadd.f32 %v61, %v174
    %v176 = vpop.f32.mrf.mxu0
    %177 = vmatprep.mubr.f32.mxu0 0.0
    %178 = vmatmul.mubr.f32.gmra.mxu0 %v80
    %v179 = vpop.f32.mrf.mxu0
    %v180 = vadd.f32 %v61, %v179
    %v181 = vpop.f32.mrf.mxu0
    %182 = vmatprep.mubr.f32.mxu0 0.0
    %183 = vmatmul.mubr.f32.gmra.mxu0 %v83
    %v184 = vpop.f32.mrf.mxu0
    %v185 = vadd.f32 %v61, %v184
    %v186 = vpop.f32.mrf.mxu0
    %187 = vmatprep.mubr.f32.mxu0 0.0
    %188 = vmatmul.mubr.f32.gmra.mxu0 %v86
    %v189 = vpop.f32.mrf.mxu0
    %v190 = vadd.f32 %v61, %v189
    %v191 = vpop.f32.mrf.mxu0
    %192 = vdwg.mxu0
    %v193 = vtanh.pop %v155
    %v194 = vtanh.pop %v160
    %v195 = vtanh.pop %v165
    %v196 = vtanh.pop %v170
    %v197 = vtanh.pop %v175
    %v198 = vtanh.pop %v180
    %v199 = vtanh.pop %v185
    %v200 = vtanh.pop %v190
    %v201 = vld [vmem:[%s5] sm:$0xff]
    %v202 = vld [vmem:[%s5 + $0x8] sm:$0xff]
    %v203 = vld [vmem:[%s5 + $0x10] sm:$0xff]
    %v204 = vld [vmem:[%s5 + $0x18] sm:$0xff]
    %v205 = vld [vmem:[%s5 + $0x20] sm:$0xff]
    %v206 = vld [vmem:[%s5 + $0x28] sm:$0xff]
    %v207 = vld [vmem:[%s5 + $0x30] sm:$0xff]
    %v208 = vld [vmem:[%s5 + $0x38] sm:$0xff]
    %v209 = vld [vmem:[%s5 + $0x40] sm:$0xff]
    %v210 = vld [vmem:[%s5 + $0x48] sm:$0xff]
    %v211 = vld [vmem:[%s5 + $0x50] sm:$0xff]
    %v212 = vld [vmem:[%s5 + $0x58] sm:$0xff]
    %v213 = vld [vmem:[%s5 + $0x60] sm:$0xff]
    %v214 = vld [vmem:[%s5 + $0x68] sm:$0xff]
    %v215 = vld [vmem:[%s5 + $0x70] sm:$0xff]
    %v216 = vld [vmem:[%s5 + $0x78] sm:$0xff]
    %v217 = vld [vmem:[%s6] sm:$0x1]
    %v219 = vlaneseq
    %v220 = vshrl.u32 %v219, 7
    %v221 = vsub.s32 0, %v220
    %v222 = vrot.slane %v217, %v221
    %224 = vmatprep.subr.mxu0 0.0
    %225 = vmatpush1.msra.mxu0 %v216
    %226 = vmatprep.subr.mxu0 0.0
    %227 = vmatpush1.msra.mxu0 %v215
    %228 = vmatprep.subr.mxu0 0.0
    %229 = vmatpush1.msra.mxu0 %v214
    %230 = vmatprep.subr.mxu0 0.0
    %231 = vmatpush1.msra.mxu0 %v213
    %232 = vmatprep.subr.mxu0 0.0
    %233 = vmatpush1.msra.mxu0 %v212
    %234 = vmatprep.subr.mxu0 0.0
    %235 = vmatpush1.msra.mxu0 %v211
    %236 = vmatprep.subr.mxu0 0.0
    %237 = vmatpush1.msra.mxu0 %v210
    %238 = vmatprep.subr.mxu0 0.0
    %239 = vmatpush1.msra.mxu0 %v209
    %240 = vmatprep.subr.mxu0 0.0
    %241 = vmatpush1.msra.mxu0 %v208
    %242 = vmatprep.subr.mxu0 0.0
    %243 = vmatpush1.msra.mxu0 %v207
    %244 = vmatprep.subr.mxu0 0.0
    %245 = vmatpush1.msra.mxu0 %v206
    %246 = vmatprep.subr.mxu0 0.0
    %247 = vmatpush1.msra.mxu0 %v205
    %248 = vmatprep.subr.mxu0 0.0
    %249 = vmatpush1.msra.mxu0 %v204
    %250 = vmatprep.subr.mxu0 0.0
    %251 = vmatpush1.msra.mxu0 %v203
    %252 = vmatprep.subr.mxu0 0.0
    %253 = vmatpush1.msra.mxu0 %v202
    %254 = vmatprep.subr.mxu0 0.0
    %255 = vmatpush1.msra.mxu0 %v201
    %256 = vmatprep.subr.mxu0 0.0
    %257 = vmatpush2.msra.mxu0 0.0
    %258 = vmatprep.subr.mxu0 0.0
    %259 = vmatpush2.msra.mxu0 0.0
    %260 = vmatprep.subr.mxu0 0.0
    %261 = vmatpush2.msra.mxu0 0.0
    %262 = vmatprep.subr.mxu0 0.0
    %263 = vmatpush2.msra.mxu0 0.0
    %264 = vmatprep.subr.mxu0 0.0
    %265 = vmatpush2.msra.mxu0 0.0
    %266 = vmatprep.subr.mxu0 0.0
    %267 = vmatpush2.msra.mxu0 0.0
    %268 = vmatprep.subr.mxu0 0.0
    %269 = vmatpush2.msra.mxu0 0.0
    %270 = vmatprep.subr.mxu0 0.0
    %271 = vmatpush2.msra.mxu0 0.0
    %272 = vmatprep.subr.mxu0 0.0
    %273 = vmatpush2.msra.mxu0 0.0
    %274 = vmatprep.subr.mxu0 0.0
    %275 = vmatpush2.msra.mxu0 0.0
    %276 = vmatprep.subr.mxu0 0.0
    %277 = vmatpush2.msra.mxu0 0.0
    %278 = vmatprep.subr.mxu0 0.0
    %279 = vmatpush2.msra.mxu0 0.0
    %280 = vmatprep.subr.mxu0 0.0
    %281 = vmatpush2.msra.mxu0 0.0
    %282 = vmatprep.subr.mxu0 0.0
    %283 = vmatpush2.msra.mxu0 0.0
    %284 = vmatprep.subr.mxu0 0.0
    %285 = vmatpush2.msra.mxu0 0.0
    %286 = vmatprep.subr.mxu0 0.0
    %287 = vmatpush2.msra.mxu0 0.0
    %288 = vmatprep.mubr.f32.mxu0 0.0
    %289 = vmatmul.mubr.f32.gmra.mxu0 %v193
    %v290 = vpop.f32.mrf.mxu0
    %v291 = vadd.f32 %v222, %v290
    %v292 = vpop.f32.mrf.mxu0
    %293 = vmatprep.mubr.f32.mxu0 0.0
    %294 = vmatmul.mubr.f32.gmra.mxu0 %v194
    %v295 = vpop.f32.mrf.mxu0
    %v296 = vadd.f32 %v222, %v295
    %v297 = vpop.f32.mrf.mxu0
    %298 = vmatprep.mubr.f32.mxu0 0.0
    %299 = vmatmul.mubr.f32.gmra.mxu0 %v195
    %v300 = vpop.f32.mrf.mxu0
    %v301 = vadd.f32 %v222, %v300
    %v302 = vpop.f32.mrf.mxu0
    %303 = vmatprep.mubr.f32.mxu0 0.0
    %304 = vmatmul.mubr.f32.gmra.mxu0 %v196
    %v305 = vpop.f32.mrf.mxu0
    %v306 = vadd.f32 %v222, %v305
    %v307 = vpop.f32.mrf.mxu0
    %308 = vmatprep.mubr.f32.mxu0 0.0
    %309 = vmatmul.mubr.f32.gmra.mxu0 %v197
    %v310 = vpop.f32.mrf.mxu0
    %v311 = vadd.f32 %v222, %v310
    %v312 = vpop.f32.mrf.mxu0
    %313 = vmatprep.mubr.f32.mxu0 0.0
    %314 = vmatmul.mubr.f32.gmra.mxu0 %v198
    %v315 = vpop.f32.mrf.mxu0
    %v316 = vadd.f32 %v222, %v315
    %v317 = vpop.f32.mrf.mxu0
    %318 = vmatprep.mubr.f32.mxu0 0.0
    %319 = vmatmul.mubr.f32.gmra.mxu0 %v199
    %v320 = vpop.f32.mrf.mxu0
    %v321 = vadd.f32 %v222, %v320
    %v322 = vpop.f32.mrf.mxu0
    %323 = vmatprep.mubr.f32.mxu0 0.0
    %324 = vmatmul.mubr.f32.gmra.mxu0 %v200
    %v325 = vpop.f32.mrf.mxu0
    %v326 = vadd.f32 %v222, %v325
    %v327 = vpop.f32.mrf.mxu0
    %328 = vdwg.mxu0
    %vm329 = vcmask 785408
    %330 = vst.msk [vmem:[#allocation2] sm:$0xff] %vm329, %v291
    %331 = vst.msk [vmem:[#allocation2 + $0x8] sm:$0xff] %vm329, %v296
    %332 = vst.msk [vmem:[#allocation2 + $0x10] sm:$0xff] %vm329, %v301
    %333 = vst.msk [vmem:[#allocation2 + $0x18] sm:$0xff] %vm329, %v306
    %334 = vst.msk [vmem:[#allocation2 + $0x20] sm:$0xff] %vm329, %v311
    %335 = vst.msk [vmem:[#allocation2 + $0x28] sm:$0xff] %vm329, %v316
    %336 = vst.msk [vmem:[#allocation2 + $0x30] sm:$0xff] %vm329, %v321
    %337 = vst.msk [vmem:[#allocation2 + $0x38] sm:$0xff] %vm329, %v326
    %v338 = vld [vmem:[%s1] sm:$0xff]
    %v339 = vld [vmem:[#allocation2] sm:$0xff]
    %v340 = vld [vmem:[%s7] sm:$0xff]
    %v341 = vld [vmem:[%s7 + $0x8] sm:$0xff]
    %v342 = vld [vmem:[%s7 + $0x10] sm:$0xff]
    %v343 = vld [vmem:[%s7 + $0x18] sm:$0xff]
    %v344 = vld [vmem:[%s8] sm:$0x1]
    %v346 = vlaneseq
    %v347 = vshrl.u32 %v346, 7
    %v348 = vsub.s32 0, %v347
    %v349 = vrot.slane %v344, %v348
    %vm351 = vcmask 261120
    %v353 = vsel %vm351, 0.0, 0
    %355 = vmatprep.subr.mxu0 0.0
    %356 = vmatpush1.msra.mxu0 0.0
    %357 = vmatprep.subr.mxu0 0.0
    %358 = vmatpush1.msra.mxu0 0.0
    %359 = vmatprep.subr.mxu0 0.0
    %360 = vmatpush1.msra.mxu0 0.0
    %361 = vmatprep.subr.mxu0 0.0
    %362 = vmatpush1.msra.mxu0 0.0
    %363 = vmatprep.subr.mxu0 0.0
    %364 = vmatpush1.msra.mxu0 0.0
    %365 = vmatprep.subr.mxu0 0.0
    %366 = vmatpush1.msra.mxu0 0.0
    %367 = vmatprep.subr.mxu0 0.0
    %368 = vmatpush1.msra.mxu0 0.0
    %369 = vmatprep.subr.mxu0 0.0
    %370 = vmatpush1.msra.mxu0 0.0
    %371 = vmatprep.subr.mxu0 0.0
    %372 = vmatpush1.msra.mxu0 0.0
    %373 = vmatprep.subr.mxu0 0.0
    %374 = vmatpush1.msra.mxu0 0.0
    %375 = vmatprep.subr.mxu0 0.0
    %376 = vmatpush1.msra.mxu0 0.0
    %377 = vmatprep.subr.mxu0 0.0
    %378 = vmatpush1.msra.mxu0 0.0
    %379 = vmatprep.subr.mxu0 0.0
    %380 = vmatpush1.msra.mxu0 %v343
    %381 = vmatprep.subr.mxu0 0.0
    %382 = vmatpush1.msra.mxu0 %v342
    %383 = vmatprep.subr.mxu0 0.0
    %384 = vmatpush1.msra.mxu0 %v341
    %385 = vmatprep.subr.mxu0 0.0
    %386 = vmatpush1.msra.mxu0 %v340
    %387 = vmatprep.subr.mxu0 0.0
    %388 = vmatpush2.msra.mxu0 0.0
    %389 = vmatprep.subr.mxu0 0.0
    %390 = vmatpush2.msra.mxu0 0.0
    %391 = vmatprep.subr.mxu0 0.0
    %392 = vmatpush2.msra.mxu0 0.0
    %393 = vmatprep.subr.mxu0 0.0
    %394 = vmatpush2.msra.mxu0 0.0
    %395 = vmatprep.subr.mxu0 0.0
    %396 = vmatpush2.msra.mxu0 0.0
    %397 = vmatprep.subr.mxu0 0.0
    %398 = vmatpush2.msra.mxu0 0.0
    %399 = vmatprep.subr.mxu0 0.0
    %400 = vmatpush2.msra.mxu0 0.0
    %401 = vmatprep.subr.mxu0 0.0
    %402 = vmatpush2.msra.mxu0 0.0
    %403 = vmatprep.subr.mxu0 0.0
    %404 = vmatpush2.msra.mxu0 0.0
    %405 = vmatprep.subr.mxu0 0.0
    %406 = vmatpush2.msra.mxu0 0.0
    %407 = vmatprep.subr.mxu0 0.0
    %408 = vmatpush2.msra.mxu0 0.0
    %409 = vmatprep.subr.mxu0 0.0
    %410 = vmatpush2.msra.mxu0 0.0
    %411 = vmatprep.subr.mxu0 0.0
    %412 = vmatpush2.msra.mxu0 0.0
    %413 = vmatprep.subr.mxu0 0.0
    %414 = vmatpush2.msra.mxu0 0.0
    %415 = vmatprep.subr.mxu0 0.0
    %416 = vmatpush2.msra.mxu0 0.0
    %417 = vmatprep.subr.mxu0 0.0
    %418 = vmatpush2.msra.mxu0 0.0
    %419 = vmatprep.mubr.f32.mxu0 0.0
    %420 = vmatmul.mubr.f32.gmra.mxu0 %v353
    %v421 = vpop.f32.mrf.mxu0
    %v422 = vadd.f32 %v349, %v421
    %v423 = vpop.f32.mrf.mxu0
    %424 = vdwg.mxu0
    %v425 = vadd.f32 %v339, %v422
    %v426 = vxor.u32 %v425, 2147483648
    %v427 = vmul.f32 %v426, 1.442695
    %v428 = vpow.pop %v427
    %v429 = vadd.f32 %v428, 1.0
    %v430 = vrcp.pop %v429
    %v431 = vmul.f32 1.0, %v430
    %433 = vrot.lane.b32.xlu0 %v422, 64
    %v434 = vpop.permute.xlu0 %433
    %v436 = vmul.f32 %v431, %v434
    %438 = vrot.lane.b32.xlu0 %v436, 64
    %v439 = vpop.permute.xlu0 %438
    %v441 = vadd.f32 %v339, %v439
    %v442 = vtanh.pop %v441
    %v443 = vsub.f32 1.0, %v431
    %445 = vrot.lane.b32.xlu0 %v442, 96
    %v446 = vpop.permute.xlu0 %445
    %v448 = vmul.f32 %v443, %v446
    %v449 = vmul.f32 %v431, 0.0
    %v450 = vadd.f32 %v448, %v449
    %vm451 = vcmp.gt.s32.totalorder %v338, 0
    %v452 = vsel %vm451, 1, 0
    %453 = vset.pattern.permute.xlu0 0
    %454 = vperm.xlu0 %453, %v452
    %v455 = vpop.permute.xlu0 %454
    %vm456 = vcmp.eq.s32.totalorder %v455, 1
    %v457 = vsel %vm456, %v450, 0.0
    %s458 = scalar_lea.vmem [#allocation2], 8
    %v459 = vld [vmem:[%s458] sm:$0xff]
    %461 = vrot.lane.b32.xlu0 %v457, 96
    %v462 = vpop.permute.xlu0 %461
    %v463 = vsel %vm351, %v462, 0
    %465 = vmatprep.subr.mxu0 0.0
    %466 = vmatpush1.msra.mxu0 0.0
    %467 = vmatprep.subr.mxu0 0.0
    %468 = vmatpush1.msra.mxu0 0.0
    %469 = vmatprep.subr.mxu0 0.0
    %470 = vmatpush1.msra.mxu0 0.0
    %471 = vmatprep.subr.mxu0 0.0
    %472 = vmatpush1.msra.mxu0 0.0
    %473 = vmatprep.subr.mxu0 0.0
    %474 = vmatpush1.msra.mxu0 0.0
    %475 = vmatprep.subr.mxu0 0.0
    %476 = vmatpush1.msra.mxu0 0.0
    %477 = vmatprep.subr.mxu0 0.0
    %478 = vmatpush1.msra.mxu0 0.0
    %479 = vmatprep.subr.mxu0 0.0
    %480 = vmatpush1.msra.mxu0 0.0
    %481 = vmatprep.subr.mxu0 0.0
    %482 = vmatpush1.msra.mxu0 0.0
    %483 = vmatprep.subr.mxu0 0.0
    %484 = vmatpush1.msra.mxu0 0.0
    %485 = vmatprep.subr.mxu0 0.0
    %486 = vmatpush1.msra.mxu0 0.0
    %487 = vmatprep.subr.mxu0 0.0
    %488 = vmatpush1.msra.mxu0 0.0
    %489 = vmatprep.subr.mxu0 0.0
    %490 = vmatpush1.msra.mxu0 %v343
    %491 = vmatprep.subr.mxu0 0.0
    %492 = vmatpush1.msra.mxu0 %v342
    %493 = vmatprep.subr.mxu0 0.0
    %494 = vmatpush1.msra.mxu0 %v341
    %495 = vmatprep.subr.mxu0 0.0
    %496 = vmatpush1.msra.mxu0 %v340
    %497 = vmatprep.subr.mxu0 0.0
    %498 = vmatpush2.msra.mxu0 0.0
    %499 = vmatprep.subr.mxu0 0.0
    %500 = vmatpush2.msra.mxu0 0.0
    %501 = vmatprep.subr.mxu0 0.0
    %502 = vmatpush2.msra.mxu0 0.0
    %503 = vmatprep.subr.mxu0 0.0
    %504 = vmatpush2.msra.mxu0 0.0
    %505 = vmatprep.subr.mxu0 0.0
    %506 = vmatpush2.msra.mxu0 0.0
    %507 = vmatprep.subr.mxu0 0.0
    %508 = vmatpush2.msra.mxu0 0.0
    %509 = vmatprep.subr.mxu0 0.0
    %510 = vmatpush2.msra.mxu0 0.0
    %511 = vmatprep.subr.mxu0 0.0
    %512 = vmatpush2.msra.mxu0 0.0
    %513 = vmatprep.subr.mxu0 0.0
    %514 = vmatpush2.msra.mxu0 0.0
    %515 = vmatprep.subr.mxu0 0.0
    %516 = vmatpush2.msra.mxu0 0.0
    %517 = vmatprep.subr.mxu0 0.0
    %518 = vmatpush2.msra.mxu0 0.0
    %519 = vmatprep.subr.mxu0 0.0
    %520 = vmatpush2.msra.mxu0 0.0
    %521 = vmatprep.subr.mxu0 0.0
    %522 = vmatpush2.msra.mxu0 0.0
    %523 = vmatprep.subr.mxu0 0.0
    %524 = vmatpush2.msra.mxu0 0.0
    %525 = vmatprep.subr.mxu0 0.0
    %526 = vmatpush2.msra.mxu0 0.0
    %527 = vmatprep.subr.mxu0 0.0
    %528 = vmatpush2.msra.mxu0 0.0
    %529 = vmatprep.mubr.f32.mxu0 0.0
    %530 = vmatmul.mubr.f32.gmra.mxu0 %v463
    %v531 = vpop.f32.mrf.mxu0
    %v532 = vadd.f32 %v349, %v531
    %v533 = vpop.f32.mrf.mxu0
    %534 = vdwg.mxu0
    %v535 = vadd.f32 %v459, %v532
    %v536 = vxor.u32 %v535, 2147483648
    %v537 = vmul.f32 %v536, 1.442695
    %v538 = vpow.pop %v537
    %v539 = vadd.f32 %v538, 1.0
    %v540 = vrcp.pop %v539
    %v541 = vmul.f32 1.0, %v540
    %543 = vrot.lane.b32.xlu0 %v532, 64
    %v544 = vpop.permute.xlu0 %543
    %v546 = vmul.f32 %v541, %v544
    %548 = vrot.lane.b32.xlu0 %v546, 64
    %v549 = vpop.permute.xlu0 %548
    %v551 = vadd.f32 %v459, %v549
    %v552 = vtanh.pop %v551
    %v553 = vsub.f32 1.0, %v541
    %555 = vrot.lane.b32.xlu0 %v552, 96
    %v556 = vpop.permute.xlu0 %555
    %v558 = vmul.f32 %v553, %v556
    %v559 = vmul.f32 %v541, %v457
    %v560 = vadd.f32 %v558, %v559
    %vm561 = vcmp.gt.s32.totalorder %v338, 1
    %v562 = vsel %vm561, 1, 0
    %563 = vset.pattern.permute.xlu0 0
    %564 = vperm.xlu0 %563, %v562
    %v565 = vpop.permute.xlu0 %564
    %vm566 = vcmp.eq.s32.totalorder %v565, 1
    %v567 = vsel %vm566, %v560, %v457
    %s568 = scalar_lea.vmem [#allocation2], 16
    %v569 = vld [vmem:[%s568] sm:$0xff]
    %571 = vrot.lane.b32.xlu0 %v567, 96
    %v572 = vpop.permute.xlu0 %571
    %v573 = vsel %vm351, %v572, 0
    %575 = vmatprep.subr.mxu0 0.0
    %576 = vmatpush1.msra.mxu0 0.0
    %577 = vmatprep.subr.mxu0 0.0
    %578 = vmatpush1.msra.mxu0 0.0
    %579 = vmatprep.subr.mxu0 0.0
    %580 = vmatpush1.msra.mxu0 0.0
    %581 = vmatprep.subr.mxu0 0.0
    %582 = vmatpush1.msra.mxu0 0.0
    %583 = vmatprep.subr.mxu0 0.0
    %584 = vmatpush1.msra.mxu0 0.0
    %585 = vmatprep.subr.mxu0 0.0
    %586 = vmatpush1.msra.mxu0 0.0
    %587 = vmatprep.subr.mxu0 0.0
    %588 = vmatpush1.msra.mxu0 0.0
    %589 = vmatprep.subr.mxu0 0.0
    %590 = vmatpush1.msra.mxu0 0.0
    %591 = vmatprep.subr.mxu0 0.0
    %592 = vmatpush1.msra.mxu0 0.0
    %593 = vmatprep.subr.mxu0 0.0
    %594 = vmatpush1.msra.mxu0 0.0
    %595 = vmatprep.subr.mxu0 0.0
    %596 = vmatpush1.msra.mxu0 0.0
    %597 = vmatprep.subr.mxu0 0.0
    %598 = vmatpush1.msra.mxu0 0.0
    %599 = vmatprep.subr.mxu0 0.0
    %600 = vmatpush1.msra.mxu0 %v343
    %601 = vmatprep.subr.mxu0 0.0
    %602 = vmatpush1.msra.mxu0 %v342
    %603 = vmatprep.subr.mxu0 0.0
    %604 = vmatpush1.msra.mxu0 %v341
    %605 = vmatprep.subr.mxu0 0.0
    %606 = vmatpush1.msra.mxu0 %v340
    %607 = vmatprep.subr.mxu0 0.0
    %608 = vmatpush2.msra.mxu0 0.0
    %609 = vmatprep.subr.mxu0 0.0
    %610 = vmatpush2.msra.mxu0 0.0
    %611 = vmatprep.subr.mxu0 0.0
    %612 = vmatpush2.msra.mxu0 0.0
    %613 = vmatprep.subr.mxu0 0.0
    %614 = vmatpush2.msra.mxu0 0.0
    %615 = vmatprep.subr.mxu0 0.0
    %616 = vmatpush2.msra.mxu0 0.0
    %617 = vmatprep.subr.mxu0 0.0
    %618 = vmatpush2.msra.mxu0 0.0
    %619 = vmatprep.subr.mxu0 0.0
    %620 = vmatpush2.msra.mxu0 0.0
    %621 = vmatprep.subr.mxu0 0.0
    %622 = vmatpush2.msra.mxu0 0.0
    %623 = vmatprep.subr.mxu0 0.0
    %624 = vmatpush2.msra.mxu0 0.0
    %625 = vmatprep.subr.mxu0 0.0
    %626 = vmatpush2.msra.mxu0 0.0
    %627 = vmatprep.subr.mxu0 0.0
    %628 = vmatpush2.msra.mxu0 0.0
    %629 = vmatprep.subr.mxu0 0.0
    %630 = vmatpush2.msra.mxu0 0.0
    %631 = vmatprep.subr.mxu0 0.0
    %632 = vmatpush2.msra.mxu0 0.0
    %633 = vmatprep.subr.mxu0 0.0
    %634 = vmatpush2.msra.mxu0 0.0
    %635 = vmatprep.subr.mxu0 0.0
    %636 = vmatpush2.msra.mxu0 0.0
    %637 = vmatprep.subr.mxu0 0.0
    %638 = vmatpush2.msra.mxu0 0.0
    %639 = vmatprep.mubr.f32.mxu0 0.0
    %640 = vmatmul.mubr.f32.gmra.mxu0 %v573
    %v641 = vpop.f32.mrf.mxu0
    %v642 = vadd.f32 %v349, %v641
    %v643 = vpop.f32.mrf.mxu0
    %644 = vdwg.mxu0
    %v645 = vadd.f32 %v569, %v642
    %v646 = vxor.u32 %v645, 2147483648
    %v647 = vmul.f32 %v646, 1.442695
    %v648 = vpow.pop %v647
    %v649 = vadd.f32 %v648, 1.0
    %v650 = vrcp.pop %v649
    %v651 = vmul.f32 1.0, %v650
    %653 = vrot.lane.b32.xlu0 %v642, 64
    %v654 = vpop.permute.xlu0 %653
    %v656 = vmul.f32 %v651, %v654
    %658 = vrot.lane.b32.xlu0 %v656, 64
    %v659 = vpop.permute.xlu0 %658
    %v661 = vadd.f32 %v569, %v659
    %v662 = vtanh.pop %v661
    %v663 = vsub.f32 1.0, %v651
    %665 = vrot.lane.b32.xlu0 %v662, 96
    %v666 = vpop.permute.xlu0 %665
    %v668 = vmul.f32 %v663, %v666
    %v669 = vmul.f32 %v651, %v567
    %v670 = vadd.f32 %v668, %v669
    %vm671 = vcmp.gt.s32.totalorder %v338, 2
    %v672 = vsel %vm671, 1, 0
    %673 = vset.pattern.permute.xlu0 0
    %674 = vperm.xlu0 %673, %v672
    %v675 = vpop.permute.xlu0 %674
    %vm676 = vcmp.eq.s32.totalorder %v675, 1
    %v677 = vsel %vm676, %v670, %v567
    %s678 = scalar_lea.vmem [#allocation2], 24
    %v679 = vld [vmem:[%s678] sm:$0xff]
    %681 = vrot.lane.b32.xlu0 %v677, 96
    %v682 = vpop.permute.xlu0 %681
    %v683 = vsel %vm351, %v682, 0
    %685 = vmatprep.subr.mxu0 0.0
    %686 = vmatpush1.msra.mxu0 0.0
    %687 = vmatprep.subr.mxu0 0.0
    %688 = vmatpush1.msra.mxu0 0.0
    %689 = vmatprep.subr.mxu0 0.0
    %690 = vmatpush1.msra.mxu0 0.0
    %691 = vmatprep.subr.mxu0 0.0
    %692 = vmatpush1.msra.mxu0 0.0
    %693 = vmatprep.subr.mxu0 0.0
    %694 = vmatpush1.msra.mxu0 0.0
    %695 = vmatprep.subr.mxu0 0.0
    %696 = vmatpush1.msra.mxu0 0.0
    %697 = vmatprep.subr.mxu0 0.0
    %698 = vmatpush1.msra.mxu0 0.0
    %699 = vmatprep.subr.mxu0 0.0
    %700 = vmatpush1.msra.mxu0 0.0
    %701 = vmatprep.subr.mxu0 0.0
    %702 = vmatpush1.msra.mxu0 0.0
    %703 = vmatprep.subr.mxu0 0.0
    %704 = vmatpush1.msra.mxu0 0.0
    %705 = vmatprep.subr.mxu0 0.0
    %706 = vmatpush1.msra.mxu0 0.0
    %707 = vmatprep.subr.mxu0 0.0
    %708 = vmatpush1.msra.mxu0 0.0
    %709 = vmatprep.subr.mxu0 0.0
    %710 = vmatpush1.msra.mxu0 %v343
    %711 = vmatprep.subr.mxu0 0.0
    %712 = vmatpush1.msra.mxu0 %v342
    %713 = vmatprep.subr.mxu0 0.0
    %714 = vmatpush1.msra.mxu0 %v341
    %715 = vmatprep.subr.mxu0 0.0
    %716 = vmatpush1.msra.mxu0 %v340
    %717 = vmatprep.subr.mxu0 0.0
    %718 = vmatpush2.msra.mxu0 0.0
    %719 = vmatprep.subr.mxu0 0.0
    %720 = vmatpush2.msra.mxu0 0.0
    %721 = vmatprep.subr.mxu0 0.0
    %722 = vmatpush2.msra.mxu0 0.0
    %723 = vmatprep.subr.mxu0 0.0
    %724 = vmatpush2.msra.mxu0 0.0
    %725 = vmatprep.subr.mxu0 0.0
    %726 = vmatpush2.msra.mxu0 0.0
    %727 = vmatprep.subr.mxu0 0.0
    %728 = vmatpush2.msra.mxu0 0.0
    %729 = vmatprep.subr.mxu0 0.0
    %730 = vmatpush2.msra.mxu0 0.0
    %731 = vmatprep.subr.mxu0 0.0
    %732 = vmatpush2.msra.mxu0 0.0
    %733 = vmatprep.subr.mxu0 0.0
    %734 = vmatpush2.msra.mxu0 0.0
    %735 = vmatprep.subr.mxu0 0.0
    %736 = vmatpush2.msra.mxu0 0.0
    %737 = vmatprep.subr.mxu0 0.0
    %738 = vmatpush2.msra.mxu0 0.0
    %739 = vmatprep.subr.mxu0 0.0
    %740 = vmatpush2.msra.mxu0 0.0
    %741 = vmatprep.subr.mxu0 0.0
    %742 = vmatpush2.msra.mxu0 0.0
    %743 = vmatprep.subr.mxu0 0.0
    %744 = vmatpush2.msra.mxu0 0.0
    %745 = vmatprep.subr.mxu0 0.0
    %746 = vmatpush2.msra.mxu0 0.0
    %747 = vmatprep.subr.mxu0 0.0
    %748 = vmatpush2.msra.mxu0 0.0
    %749 = vmatprep.mubr.f32.mxu0 0.0
    %750 = vmatmul.mubr.f32.gmra.mxu0 %v683
    %v751 = vpop.f32.mrf.mxu0
    %v752 = vadd.f32 %v349, %v751
    %v753 = vpop.f32.mrf.mxu0
    %754 = vdwg.mxu0
    %v755 = vadd.f32 %v679, %v752
    %v756 = vxor.u32 %v755, 2147483648
    %v757 = vmul.f32 %v756, 1.442695
    %v758 = vpow.pop %v757
    %v759 = vadd.f32 %v758, 1.0
    %v760 = vrcp.pop %v759
    %v761 = vmul.f32 1.0, %v760
    %763 = vrot.lane.b32.xlu0 %v752, 64
    %v764 = vpop.permute.xlu0 %763
    %v766 = vmul.f32 %v761, %v764
    %768 = vrot.lane.b32.xlu0 %v766, 64
    %v769 = vpop.permute.xlu0 %768
    %v771 = vadd.f32 %v679, %v769
    %v772 = vtanh.pop %v771
    %v773 = vsub.f32 1.0, %v761
    %775 = vrot.lane.b32.xlu0 %v772, 96
    %v776 = vpop.permute.xlu0 %775
    %v778 = vmul.f32 %v773, %v776
    %v779 = vmul.f32 %v761, %v677
    %v780 = vadd.f32 %v778, %v779
    %vm781 = vcmp.gt.s32.totalorder %v338, 3
    %v782 = vsel %vm781, 1, 0
    %783 = vset.pattern.permute.xlu0 0
    %784 = vperm.xlu0 %783, %v782
    %v785 = vpop.permute.xlu0 %784
    %vm786 = vcmp.eq.s32.totalorder %v785, 1
    %v787 = vsel %vm786, %v780, %v677
    %s788 = scalar_lea.vmem [#allocation2], 32
    %v789 = vld [vmem:[%s788] sm:$0xff]
    %791 = vrot.lane.b32.xlu0 %v787, 96
    %v792 = vpop.permute.xlu0 %791
    %v793 = vsel %vm351, %v792, 0
    %795 = vmatprep.subr.mxu0 0.0
    %796 = vmatpush1.msra.mxu0 0.0
    %797 = vmatprep.subr.mxu0 0.0
    %798 = vmatpush1.msra.mxu0 0.0
    %799 = vmatprep.subr.mxu0 0.0
    %800 = vmatpush1.msra.mxu0 0.0
    %801 = vmatprep.subr.mxu0 0.0
    %802 = vmatpush1.msra.mxu0 0.0
    %803 = vmatprep.subr.mxu0 0.0
    %804 = vmatpush1.msra.mxu0 0.0
    %805 = vmatprep.subr.mxu0 0.0
    %806 = vmatpush1.msra.mxu0 0.0
    %807 = vmatprep.subr.mxu0 0.0
    %808 = vmatpush1.msra.mxu0 0.0
    %809 = vmatprep.subr.mxu0 0.0
    %810 = vmatpush1.msra.mxu0 0.0
    %811 = vmatprep.subr.mxu0 0.0
    %812 = vmatpush1.msra.mxu0 0.0
    %813 = vmatprep.subr.mxu0 0.0
    %814 = vmatpush1.msra.mxu0 0.0
    %815 = vmatprep.subr.mxu0 0.0
    %816 = vmatpush1.msra.mxu0 0.0
    %817 = vmatprep.subr.mxu0 0.0
    %818 = vmatpush1.msra.mxu0 0.0
    %819 = vmatprep.subr.mxu0 0.0
    %820 = vmatpush1.msra.mxu0 %v343
    %821 = vmatprep.subr.mxu0 0.0
    %822 = vmatpush1.msra.mxu0 %v342
    %823 = vmatprep.subr.mxu0 0.0
    %824 = vmatpush1.msra.mxu0 %v341
    %825 = vmatprep.subr.mxu0 0.0
    %826 = vmatpush1.msra.mxu0 %v340
    %827 = vmatprep.subr.mxu0 0.0
    %828 = vmatpush2.msra.mxu0 0.0
    %829 = vmatprep.subr.mxu0 0.0
    %830 = vmatpush2.msra.mxu0 0.0
    %831 = vmatprep.subr.mxu0 0.0
    %832 = vmatpush2.msra.mxu0 0.0
    %833 = vmatprep.subr.mxu0 0.0
    %834 = vmatpush2.msra.mxu0 0.0
    %835 = vmatprep.subr.mxu0 0.0
    %836 = vmatpush2.msra.mxu0 0.0
    %837 = vmatprep.subr.mxu0 0.0
    %838 = vmatpush2.msra.mxu0 0.0
    %839 = vmatprep.subr.mxu0 0.0
    %840 = vmatpush2.msra.mxu0 0.0
    %841 = vmatprep.subr.mxu0 0.0
    %842 = vmatpush2.msra.mxu0 0.0
    %843 = vmatprep.subr.mxu0 0.0
    %844 = vmatpush2.msra.mxu0 0.0
    %845 = vmatprep.subr.mxu0 0.0
    %846 = vmatpush2.msra.mxu0 0.0
    %847 = vmatprep.subr.mxu0 0.0
    %848 = vmatpush2.msra.mxu0 0.0
    %849 = vmatprep.subr.mxu0 0.0
    %850 = vmatpush2.msra.mxu0 0.0
    %851 = vmatprep.subr.mxu0 0.0
    %852 = vmatpush2.msra.mxu0 0.0
    %853 = vmatprep.subr.mxu0 0.0
    %854 = vmatpush2.msra.mxu0 0.0
    %855 = vmatprep.subr.mxu0 0.0
    %856 = vmatpush2.msra.mxu0 0.0
    %857 = vmatprep.subr.mxu0 0.0
    %858 = vmatpush2.msra.mxu0 0.0
    %859 = vmatprep.mubr.f32.mxu0 0.0
    %860 = vmatmul.mubr.f32.gmra.mxu0 %v793
    %v861 = vpop.f32.mrf.mxu0
    %v862 = vadd.f32 %v349, %v861
    %v863 = vpop.f32.mrf.mxu0
    %864 = vdwg.mxu0
    %v865 = vadd.f32 %v789, %v862
    %v866 = vxor.u32 %v865, 2147483648
    %v867 = vmul.f32 %v866, 1.442695
    %v868 = vpow.pop %v867
    %v869 = vadd.f32 %v868, 1.0
    %v870 = vrcp.pop %v869
    %v871 = vmul.f32 1.0, %v870
    %873 = vrot.lane.b32.xlu0 %v862, 64
    %v874 = vpop.permute.xlu0 %873
    %v876 = vmul.f32 %v871, %v874
    %878 = vrot.lane.b32.xlu0 %v876, 64
    %v879 = vpop.permute.xlu0 %878
    %v881 = vadd.f32 %v789, %v879
    %v882 = vtanh.pop %v881
    %v883 = vsub.f32 1.0, %v871
    %885 = vrot.lane.b32.xlu0 %v882, 96
    %v886 = vpop.permute.xlu0 %885
    %v888 = vmul.f32 %v883, %v886
    %v889 = vmul.f32 %v871, %v787
    %v890 = vadd.f32 %v888, %v889
    %vm891 = vcmp.gt.s32.totalorder %v338, 4
    %v892 = vsel %vm891, 1, 0
    %893 = vset.pattern.permute.xlu0 0
    %894 = vperm.xlu0 %893, %v892
    %v895 = vpop.permute.xlu0 %894
    %vm896 = vcmp.eq.s32.totalorder %v895, 1
    %v897 = vsel %vm896, %v890, %v787
    %s898 = scalar_lea.vmem [#allocation2], 40
    %v899 = vld [vmem:[%s898] sm:$0xff]
    %901 = vrot.lane.b32.xlu0 %v897, 96
    %v902 = vpop.permute.xlu0 %901
    %v903 = vsel %vm351, %v902, 0
    %905 = vmatprep.subr.mxu0 0.0
    %906 = vmatpush1.msra.mxu0 0.0
    %907 = vmatprep.subr.mxu0 0.0
    %908 = vmatpush1.msra.mxu0 0.0
    %909 = vmatprep.subr.mxu0 0.0
    %910 = vmatpush1.msra.mxu0 0.0
    %911 = vmatprep.subr.mxu0 0.0
    %912 = vmatpush1.msra.mxu0 0.0
    %913 = vmatprep.subr.mxu0 0.0
    %914 = vmatpush1.msra.mxu0 0.0
    %915 = vmatprep.subr.mxu0 0.0
    %916 = vmatpush1.msra.mxu0 0.0
    %917 = vmatprep.subr.mxu0 0.0
    %918 = vmatpush1.msra.mxu0 0.0
    %919 = vmatprep.subr.mxu0 0.0
    %920 = vmatpush1.msra.mxu0 0.0
    %921 = vmatprep.subr.mxu0 0.0
    %922 = vmatpush1.msra.mxu0 0.0
    %923 = vmatprep.subr.mxu0 0.0
    %924 = vmatpush1.msra.mxu0 0.0
    %925 = vmatprep.subr.mxu0 0.0
    %926 = vmatpush1.msra.mxu0 0.0
    %927 = vmatprep.subr.mxu0 0.0
    %928 = vmatpush1.msra.mxu0 0.0
    %929 = vmatprep.subr.mxu0 0.0
    %930 = vmatpush1.msra.mxu0 %v343
    %931 = vmatprep.subr.mxu0 0.0
    %932 = vmatpush1.msra.mxu0 %v342
    %933 = vmatprep.subr.mxu0 0.0
    %934 = vmatpush1.msra.mxu0 %v341
    %935 = vmatprep.subr.mxu0 0.0
    %936 = vmatpush1.msra.mxu0 %v340
    %937 = vmatprep.subr.mxu0 0.0
    %938 = vmatpush2.msra.mxu0 0.0
    %939 = vmatprep.subr.mxu0 0.0
    %940 = vmatpush2.msra.mxu0 0.0
    %941 = vmatprep.subr.mxu0 0.0
    %942 = vmatpush2.msra.mxu0 0.0
    %943 = vmatprep.subr.mxu0 0.0
    %944 = vmatpush2.msra.mxu0 0.0
    %945 = vmatprep.subr.mxu0 0.0
    %946 = vmatpush2.msra.mxu0 0.0
    %947 = vmatprep.subr.mxu0 0.0
    %948 = vmatpush2.msra.mxu0 0.0
    %949 = vmatprep.subr.mxu0 0.0
    %950 = vmatpush2.msra.mxu0 0.0
    %951 = vmatprep.subr.mxu0 0.0
    %952 = vmatpush2.msra.mxu0 0.0
    %953 = vmatprep.subr.mxu0 0.0
    %954 = vmatpush2.msra.mxu0 0.0
    %955 = vmatprep.subr.mxu0 0.0
    %956 = vmatpush2.msra.mxu0 0.0
    %957 = vmatprep.subr.mxu0 0.0
    %958 = vmatpush2.msra.mxu0 0.0
    %959 = vmatprep.subr.mxu0 0.0
    %960 = vmatpush2.msra.mxu0 0.0
    %961 = vmatprep.subr.mxu0 0.0
    %962 = vmatpush2.msra.mxu0 0.0
    %963 = vmatprep.subr.mxu0 0.0
    %964 = vmatpush2.msra.mxu0 0.0
    %965 = vmatprep.subr.mxu0 0.0
    %966 = vmatpush2.msra.mxu0 0.0
    %967 = vmatprep.subr.mxu0 0.0
    %968 = vmatpush2.msra.mxu0 0.0
    %969 = vmatprep.mubr.f32.mxu0 0.0
    %970 = vmatmul.mubr.f32.gmra.mxu0 %v903
    %v971 = vpop.f32.mrf.mxu0
    %v972 = vadd.f32 %v349, %v971
    %v973 = vpop.f32.mrf.mxu0
    %974 = vdwg.mxu0
    %v975 = vadd.f32 %v899, %v972
    %v976 = vxor.u32 %v975, 2147483648
    %v977 = vmul.f32 %v976, 1.442695
    %v978 = vpow.pop %v977
    %v979 = vadd.f32 %v978, 1.0
    %v980 = vrcp.pop %v979
    %v981 = vmul.f32 1.0, %v980
    %983 = vrot.lane.b32.xlu0 %v972, 64
    %v984 = vpop.permute.xlu0 %983
    %v986 = vmul.f32 %v981, %v984
    %988 = vrot.lane.b32.xlu0 %v986, 64
    %v989 = vpop.permute.xlu0 %988
    %v991 = vadd.f32 %v899, %v989
    %v992 = vtanh.pop %v991
    %v993 = vsub.f32 1.0, %v981
    %995 = vrot.lane.b32.xlu0 %v992, 96
    %v996 = vpop.permute.xlu0 %995
    %v998 = vmul.f32 %v993, %v996
    %v999 = vmul.f32 %v981, %v897
    %v1000 = vadd.f32 %v998, %v999
    %vm1001 = vcmp.gt.s32.totalorder %v338, 5
    %v1002 = vsel %vm1001, 1, 0
    %1003 = vset.pattern.permute.xlu0 0
    %1004 = vperm.xlu0 %1003, %v1002
    %v1005 = vpop.permute.xlu0 %1004
    %vm1006 = vcmp.eq.s32.totalorder %v1005, 1
    %v1007 = vsel %vm1006, %v1000, %v897
    %s1008 = scalar_lea.vmem [#allocation2], 48
    %v1009 = vld [vmem:[%s1008] sm:$0xff]
    %1011 = vrot.lane.b32.xlu0 %v1007, 96
    %v1012 = vpop.permute.xlu0 %1011
    %v1013 = vsel %vm351, %v1012, 0
    %1015 = vmatprep.subr.mxu0 0.0
    %1016 = vmatpush1.msra.mxu0 0.0
    %1017 = vmatprep.subr.mxu0 0.0
    %1018 = vmatpush1.msra.mxu0 0.0
    %1019 = vmatprep.subr.mxu0 0.0
    %1020 = vmatpush1.msra.mxu0 0.0
    %1021 = vmatprep.subr.mxu0 0.0
    %1022 = vmatpush1.msra.mxu0 0.0
    %1023 = vmatprep.subr.mxu0 0.0
    %1024 = vmatpush1.msra.mxu0 0.0
    %1025 = vmatprep.subr.mxu0 0.0
    %1026 = vmatpush1.msra.mxu0 0.0
    %1027 = vmatprep.subr.mxu0 0.0
    %1028 = vmatpush1.msra.mxu0 0.0
    %1029 = vmatprep.subr.mxu0 0.0
    %1030 = vmatpush1.msra.mxu0 0.0
    %1031 = vmatprep.subr.mxu0 0.0
    %1032 = vmatpush1.msra.mxu0 0.0
    %1033 = vmatprep.subr.mxu0 0.0
    %1034 = vmatpush1.msra.mxu0 0.0
    %1035 = vmatprep.subr.mxu0 0.0
    %1036 = vmatpush1.msra.mxu0 0.0
    %1037 = vmatprep.subr.mxu0 0.0
    %1038 = vmatpush1.msra.mxu0 0.0
    %1039 = vmatprep.subr.mxu0 0.0
    %1040 = vmatpush1.msra.mxu0 %v343
    %1041 = vmatprep.subr.mxu0 0.0
    %1042 = vmatpush1.msra.mxu0 %v342
    %1043 = vmatprep.subr.mxu0 0.0
    %1044 = vmatpush1.msra.mxu0 %v341
    %1045 = vmatprep.subr.mxu0 0.0
    %1046 = vmatpush1.msra.mxu0 %v340
    %1047 = vmatprep.subr.mxu0 0.0
    %1048 = vmatpush2.msra.mxu0 0.0
    %1049 = vmatprep.subr.mxu0 0.0
    %1050 = vmatpush2.msra.mxu0 0.0
    %1051 = vmatprep.subr.mxu0 0.0
    %1052 = vmatpush2.msra.mxu0 0.0
    %1053 = vmatprep.subr.mxu0 0.0
    %1054 = vmatpush2.msra.mxu0 0.0
    %1055 = vmatprep.subr.mxu0 0.0
    %1056 = vmatpush2.msra.mxu0 0.0
    %1057 = vmatprep.subr.mxu0 0.0
    %1058 = vmatpush2.msra.mxu0 0.0
    %1059 = vmatprep.subr.mxu0 0.0
    %1060 = vmatpush2.msra.mxu0 0.0
    %1061 = vmatprep.subr.mxu0 0.0
    %1062 = vmatpush2.msra.mxu0 0.0
    %1063 = vmatprep.subr.mxu0 0.0
    %1064 = vmatpush2.msra.mxu0 0.0
    %1065 = vmatprep.subr.mxu0 0.0
    %1066 = vmatpush2.msra.mxu0 0.0
    %1067 = vmatprep.subr.mxu0 0.0
    %1068 = vmatpush2.msra.mxu0 0.0
    %1069 = vmatprep.subr.mxu0 0.0
    %1070 = vmatpush2.msra.mxu0 0.0
    %1071 = vmatprep.subr.mxu0 0.0
    %1072 = vmatpush2.msra.mxu0 0.0
    %1073 = vmatprep.subr.mxu0 0.0
    %1074 = vmatpush2.msra.mxu0 0.0
    %1075 = vmatprep.subr.mxu0 0.0
    %1076 = vmatpush2.msra.mxu0 0.0
    %1077 = vmatprep.subr.mxu0 0.0
    %1078 = vmatpush2.msra.mxu0 0.0
    %1079 = vmatprep.mubr.f32.mxu0 0.0
    %1080 = vmatmul.mubr.f32.gmra.mxu0 %v1013
    %v1081 = vpop.f32.mrf.mxu0
    %v1082 = vadd.f32 %v349, %v1081
    %v1083 = vpop.f32.mrf.mxu0
    %1084 = vdwg.mxu0
    %v1085 = vadd.f32 %v1009, %v1082
    %v1086 = vxor.u32 %v1085, 2147483648
    %v1087 = vmul.f32 %v1086, 1.442695
    %v1088 = vpow.pop %v1087
    %v1089 = vadd.f32 %v1088, 1.0
    %v1090 = vrcp.pop %v1089
    %v1091 = vmul.f32 1.0, %v1090
    %1093 = vrot.lane.b32.xlu0 %v1082, 64
    %v1094 = vpop.permute.xlu0 %1093
    %v1096 = vmul.f32 %v1091, %v1094
    %1098 = vrot.lane.b32.xlu0 %v1096, 64
    %v1099 = vpop.permute.xlu0 %1098
    %v1101 = vadd.f32 %v1009, %v1099
    %v1102 = vtanh.pop %v1101
    %v1103 = vsub.f32 1.0, %v1091
    %1105 = vrot.lane.b32.xlu0 %v1102, 96
    %v1106 = vpop.permute.xlu0 %1105
    %v1108 = vmul.f32 %v1103, %v1106
    %v1109 = vmul.f32 %v1091, %v1007
    %v1110 = vadd.f32 %v1108, %v1109
    %vm1111 = vcmp.gt.s32.totalorder %v338, 6
    %v1112 = vsel %vm1111, 1, 0
    %1113 = vset.pattern.permute.xlu0 0
    %1114 = vperm.xlu0 %1113, %v1112
    %v1115 = vpop.permute.xlu0 %1114
    %vm1116 = vcmp.eq.s32.totalorder %v1115, 1
    %v1117 = vsel %vm1116, %v1110, %v1007
    %s1118 = scalar_lea.vmem [#allocation2], 56
    %v1119 = vld [vmem:[%s1118] sm:$0xff]
    %1121 = vrot.lane.b32.xlu0 %v1117, 96
    %v1122 = vpop.permute.xlu0 %1121
    %v1123 = vsel %vm351, %v1122, 0
    %1125 = vmatprep.subr.mxu0 0.0
    %1126 = vmatpush1.msra.mxu0 0.0
    %1127 = vmatprep.subr.mxu0 0.0
    %1128 = vmatpush1.msra.mxu0 0.0
    %1129 = vmatprep.subr.mxu0 0.0
    %1130 = vmatpush1.msra.mxu0 0.0
    %1131 = vmatprep.subr.mxu0 0.0
    %1132 = vmatpush1.msra.mxu0 0.0
    %1133 = vmatprep.subr.mxu0 0.0
    %1134 = vmatpush1.msra.mxu0 0.0
    %1135 = vmatprep.subr.mxu0 0.0
    %1136 = vmatpush1.msra.mxu0 0.0
    %1137 = vmatprep.subr.mxu0 0.0
    %1138 = vmatpush1.msra.mxu0 0.0
    %1139 = vmatprep.subr.mxu0 0.0
    %1140 = vmatpush1.msra.mxu0 0.0
    %1141 = vmatprep.subr.mxu0 0.0
    %1142 = vmatpush1.msra.mxu0 0.0
    %1143 = vmatprep.subr.mxu0 0.0
    %1144 = vmatpush1.msra.mxu0 0.0
    %1145 = vmatprep.subr.mxu0 0.0
    %1146 = vmatpush1.msra.mxu0 0.0
    %1147 = vmatprep.subr.mxu0 0.0
    %1148 = vmatpush1.msra.mxu0 0.0
    %1149 = vmatprep.subr.mxu0 0.0
    %1150 = vmatpush1.msra.mxu0 %v343
    %1151 = vmatprep.subr.mxu0 0.0
    %1152 = vmatpush1.msra.mxu0 %v342
    %1153 = vmatprep.subr.mxu0 0.0
    %1154 = vmatpush1.msra.mxu0 %v341
    %1155 = vmatprep.subr.mxu0 0.0
    %1156 = vmatpush1.msra.mxu0 %v340
    %1157 = vmatprep.subr.mxu0 0.0
    %1158 = vmatpush2.msra.mxu0 0.0
    %1159 = vmatprep.subr.mxu0 0.0
    %1160 = vmatpush2.msra.mxu0 0.0
    %1161 = vmatprep.subr.mxu0 0.0
    %1162 = vmatpush2.msra.mxu0 0.0
    %1163 = vmatprep.subr.mxu0 0.0
    %1164 = vmatpush2.msra.mxu0 0.0
    %1165 = vmatprep.subr.mxu0 0.0
    %1166 = vmatpush2.msra.mxu0 0.0
    %1167 = vmatprep.subr.mxu0 0.0
    %1168 = vmatpush2.msra.mxu0 0.0
    %1169 = vmatprep.subr.mxu0 0.0
    %1170 = vmatpush2.msra.mxu0 0.0
    %1171 = vmatprep.subr.mxu0 0.0
    %1172 = vmatpush2.msra.mxu0 0.0
    %1173 = vmatprep.subr.mxu0 0.0
    %1174 = vmatpush2.msra.mxu0 0.0
    %1175 = vmatprep.subr.mxu0 0.0
    %1176 = vmatpush2.msra.mxu0 0.0
    %1177 = vmatprep.subr.mxu0 0.0
    %1178 = vmatpush2.msra.mxu0 0.0
    %1179 = vmatprep.subr.mxu0 0.0
    %1180 = vmatpush2.msra.mxu0 0.0
    %1181 = vmatprep.subr.mxu0 0.0
    %1182 = vmatpush2.msra.mxu0 0.0
    %1183 = vmatprep.subr.mxu0 0.0
    %1184 = vmatpush2.msra.mxu0 0.0
    %1185 = vmatprep.subr.mxu0 0.0
    %1186 = vmatpush2.msra.mxu0 0.0
    %1187 = vmatprep.subr.mxu0 0.0
    %1188 = vmatpush2.msra.mxu0 0.0
    %1189 = vmatprep.mubr.f32.mxu0 0.0
    %1190 = vmatmul.mubr.f32.gmra.mxu0 %v1123
    %v1191 = vpop.f32.mrf.mxu0
    %v1192 = vadd.f32 %v349, %v1191
    %v1193 = vpop.f32.mrf.mxu0
    %1194 = vdwg.mxu0
    %v1195 = vadd.f32 %v1119, %v1192
    %v1196 = vxor.u32 %v1195, 2147483648
    %v1197 = vmul.f32 %v1196, 1.442695
    %v1198 = vpow.pop %v1197
    %v1199 = vadd.f32 %v1198, 1.0
    %v1200 = vrcp.pop %v1199
    %v1201 = vmul.f32 1.0, %v1200
    %1203 = vrot.lane.b32.xlu0 %v1192, 64
    %v1204 = vpop.permute.xlu0 %1203
    %v1206 = vmul.f32 %v1201, %v1204
    %1208 = vrot.lane.b32.xlu0 %v1206, 64
    %v1209 = vpop.permute.xlu0 %1208
    %v1211 = vadd.f32 %v1119, %v1209
    %v1212 = vtanh.pop %v1211
    %v1213 = vsub.f32 1.0, %v1201
    %1215 = vrot.lane.b32.xlu0 %v1212, 96
    %v1216 = vpop.permute.xlu0 %1215
    %v1218 = vmul.f32 %v1213, %v1216
    %v1219 = vmul.f32 %v1201, %v1117
    %v1220 = vadd.f32 %v1218, %v1219
    %vm1221 = vcmp.gt.s32.totalorder %v338, 7
    %v1222 = vsel %vm1221, 1, 0
    %1223 = vset.pattern.permute.xlu0 0
    %1224 = vperm.xlu0 %1223, %v1222
    %v1225 = vpop.permute.xlu0 %1224
    %vm1226 = vcmp.eq.s32.totalorder %v1225, 1
    %v1227 = vsel %vm1226, %v1220, %v1117
    %s1228 = sld [smem:[#allocation3]]
    %v1229 = vstv %s1228
    %vm1230 = vcmp.ge.s32.totalorder %v338, %v1229
    %v1231 = vsel %vm1230, 1, 0
    %1232 = vset.pattern.permute.xlu0 0
    %1233 = vperm.xlu0 %1232, %v1231
    %v1234 = vpop.permute.xlu0 %1233
    %vm1235 = vcmp.eq.s32.totalorder %v1234, 1
    %v1236 = vsel %vm1235, %v1227, 0.0
    %v1237 = vtanh.pop %v1236
    %v1238 = vld [vmem:[%s9] sm:$0xff]
    %v1239 = vld [vmem:[%s9 + $0x8] sm:$0xff]
    %v1240 = vld [vmem:[%s9 + $0x10] sm:$0xff]
    %v1241 = vld [vmem:[%s9 + $0x18] sm:$0xff]
    %v1242 = vld [vmem:[%s10] sm:$0x1]
    %v1244 = vlaneseq
    %v1245 = vshrl.u32 %v1244, 7
    %v1246 = vsub.s32 0, %v1245
    %v1247 = vrot.slane %v1242, %v1246
    %1250 = vrot.lane.b32.xlu0 %v1237, 96
    %v1251 = vpop.permute.xlu0 %1250
    %v1252 = vsel %vm351, %v1251, 0
    %1254 = vmatprep.subr.mxu0 0.0
    %1255 = vmatpush1.msra.mxu0 0.0
    %1256 = vmatprep.subr.mxu0 0.0
    %1257 = vmatpush1.msra.mxu0 0.0
    %1258 = vmatprep.subr.mxu0 0.0
    %1259 = vmatpush1.msra.mxu0 0.0
    %1260 = vmatprep.subr.mxu0 0.0
    %1261 = vmatpush1.msra.mxu0 0.0
    %1262 = vmatprep.subr.mxu0 0.0
    %1263 = vmatpush1.msra.mxu0 0.0
    %1264 = vmatprep.subr.mxu0 0.0
    %1265 = vmatpush1.msra.mxu0 0.0
    %1266 = vmatprep.subr.mxu0 0.0
    %1267 = vmatpush1.msra.mxu0 0.0
    %1268 = vmatprep.subr.mxu0 0.0
    %1269 = vmatpush1.msra.mxu0 0.0
    %1270 = vmatprep.subr.mxu0 0.0
    %1271 = vmatpush1.msra.mxu0 0.0
    %1272 = vmatprep.subr.mxu0 0.0
    %1273 = vmatpush1.msra.mxu0 0.0
    %1274 = vmatprep.subr.mxu0 0.0
    %1275 = vmatpush1.msra.mxu0 0.0
    %1276 = vmatprep.subr.mxu0 0.0
    %1277 = vmatpush1.msra.mxu0 0.0
    %1278 = vmatprep.subr.mxu0 0.0
    %1279 = vmatpush1.msra.mxu0 %v1241
    %1280 = vmatprep.subr.mxu0 0.0
    %1281 = vmatpush1.msra.mxu0 %v1240
    %1282 = vmatprep.subr.mxu0 0.0
    %1283 = vmatpush1.msra.mxu0 %v1239
    %1284 = vmatprep.subr.mxu0 0.0
    %1285 = vmatpush1.msra.mxu0 %v1238
    %1286 = vmatprep.subr.mxu0 0.0
    %1287 = vmatpush2.msra.mxu0 0.0
    %1288 = vmatprep.subr.mxu0 0.0
    %1289 = vmatpush2.msra.mxu0 0.0
    %1290 = vmatprep.subr.mxu0 0.0
    %1291 = vmatpush2.msra.mxu0 0.0
    %1292 = vmatprep.subr.mxu0 0.0
    %1293 = vmatpush2.msra.mxu0 0.0
    %1294 = vmatprep.subr.mxu0 0.0
    %1295 = vmatpush2.msra.mxu0 0.0
    %1296 = vmatprep.subr.mxu0 0.0
    %1297 = vmatpush2.msra.mxu0 0.0
    %1298 = vmatprep.subr.mxu0 0.0
    %1299 = vmatpush2.msra.mxu0 0.0
    %1300 = vmatprep.subr.mxu0 0.0
    %1301 = vmatpush2.msra.mxu0 0.0
    %1302 = vmatprep.subr.mxu0 0.0
    %1303 = vmatpush2.msra.mxu0 0.0
    %1304 = vmatprep.subr.mxu0 0.0
    %1305 = vmatpush2.msra.mxu0 0.0
    %1306 = vmatprep.subr.mxu0 0.0
    %1307 = vmatpush2.msra.mxu0 0.0
    %1308 = vmatprep.subr.mxu0 0.0
    %1309 = vmatpush2.msra.mxu0 0.0
    %1310 = vmatprep.subr.mxu0 0.0
    %1311 = vmatpush2.msra.mxu0 0.0
    %1312 = vmatprep.subr.mxu0 0.0
    %1313 = vmatpush2.msra.mxu0 0.0
    %1314 = vmatprep.subr.mxu0 0.0
    %1315 = vmatpush2.msra.mxu0 0.0
    %1316 = vmatprep.subr.mxu0 0.0
    %1317 = vmatpush2.msra.mxu0 0.0
    %1318 = vmatprep.mubr.f32.mxu0 0.0
    %1319 = vmatmul.mubr.f32.gmra.mxu0 %v1252
    %v1320 = vpop.f32.mrf.mxu0
    %v1321 = vadd.f32 %v1247, %v1320
    %v1322 = vpop.f32.mrf.mxu0
    %1323 = vdwg.mxu0
    %v1324 = vld [vmem:[%s11] sm:$0xff]
    %v1325 = vld [vmem:[%s12] sm:$0x1]
    %v1327 = vlaneseq
    %v1328 = vshrl.u32 %v1327, 7
    %v1329 = vsub.s32 0, %v1328
    %v1330 = vrot.slane %v1325, %v1329
    %vm1332 = vcmask 64512
    %v1334 = vsel %vm1332, %v1321, 0
    %1336 = vmatprep.subr.mxu0 0.0
    %1337 = vmatpush1.msra.mxu0 0.0
    %1338 = vmatprep.subr.mxu0 0.0
    %1339 = vmatpush1.msra.mxu0 0.0
    %1340 = vmatprep.subr.mxu0 0.0
    %1341 = vmatpush1.msra.mxu0 0.0
    %1342 = vmatprep.subr.mxu0 0.0
    %1343 = vmatpush1.msra.mxu0 0.0
    %1344 = vmatprep.subr.mxu0 0.0
    %1345 = vmatpush1.msra.mxu0 0.0
    %1346 = vmatprep.subr.mxu0 0.0
    %1347 = vmatpush1.msra.mxu0 0.0
    %1348 = vmatprep.subr.mxu0 0.0
    %1349 = vmatpush1.msra.mxu0 0.0
    %1350 = vmatprep.subr.mxu0 0.0
    %1351 = vmatpush1.msra.mxu0 0.0
    %1352 = vmatprep.subr.mxu0 0.0
    %1353 = vmatpush1.msra.mxu0 0.0
    %1354 = vmatprep.subr.mxu0 0.0
    %1355 = vmatpush1.msra.mxu0 0.0
    %1356 = vmatprep.subr.mxu0 0.0
    %1357 = vmatpush1.msra.mxu0 0.0
    %1358 = vmatprep.subr.mxu0 0.0
    %1359 = vmatpush1.msra.mxu0 0.0
    %1360 = vmatprep.subr.mxu0 0.0
    %1361 = vmatpush1.msra.mxu0 0.0
    %1362 = vmatprep.subr.mxu0 0.0
    %1363 = vmatpush1.msra.mxu0 0.0
    %1364 = vmatprep.subr.mxu0 0.0
    %1365 = vmatpush1.msra.mxu0 0.0
    %1366 = vmatprep.subr.mxu0 0.0
    %1367 = vmatpush1.msra.mxu0 %v1324
    %1368 = vmatprep.subr.mxu0 0.0
    %1369 = vmatpush2.msra.mxu0 0.0
    %1370 = vmatprep.subr.mxu0 0.0
    %1371 = vmatpush2.msra.mxu0 0.0
    %1372 = vmatprep.subr.mxu0 0.0
    %1373 = vmatpush2.msra.mxu0 0.0
    %1374 = vmatprep.subr.mxu0 0.0
    %1375 = vmatpush2.msra.mxu0 0.0
    %1376 = vmatprep.subr.mxu0 0.0
    %1377 = vmatpush2.msra.mxu0 0.0
    %1378 = vmatprep.subr.mxu0 0.0
    %1379 = vmatpush2.msra.mxu0 0.0
    %1380 = vmatprep.subr.mxu0 0.0
    %1381 = vmatpush2.msra.mxu0 0.0
    %1382 = vmatprep.subr.mxu0 0.0
    %1383 = vmatpush2.msra.mxu0 0.0
    %1384 = vmatprep.subr.mxu0 0.0
    %1385 = vmatpush2.msra.mxu0 0.0
    %1386 = vmatprep.subr.mxu0 0.0
    %1387 = vmatpush2.msra.mxu0 0.0
    %1388 = vmatprep.subr.mxu0 0.0
    %1389 = vmatpush2.msra.mxu0 0.0
    %1390 = vmatprep.subr.mxu0 0.0
    %1391 = vmatpush2.msra.mxu0 0.0
    %1392 = vmatprep.subr.mxu0 0.0
    %1393 = vmatpush2.msra.mxu0 0.0
    %1394 = vmatprep.subr.mxu0 0.0
    %1395 = vmatpush2.msra.mxu0 0.0
    %1396 = vmatprep.subr.mxu0 0.0
    %1397 = vmatpush2.msra.mxu0 0.0
    %1398 = vmatprep.subr.mxu0 0.0
    %1399 = vmatpush2.msra.mxu0 0.0
    %1400 = vmatprep.mubr.f32.mxu0 0.0
    %1401 = vmatmul.mubr.f32.gmra.mxu0 %v1334
    %v1402 = vpop.f32.mrf.mxu0
    %v1403 = vadd.f32 %v1330, %v1402
    %v1404 = vpop.f32.mrf.mxu0
    %1405 = vdwg.mxu0
    %1406 = vst [vmem:[#allocation4] sm:$0xff] %v1403
    // Predicated region
    $region54: #{tpu_custom_call.1} parent=1 // pred_check
      _
    $region55: #{tpu_custom_call.1} parent=1 // pred_check_branch
      %1408 = sbr.rel (0) target = $region57
    $region56: #{tpu_custom_call.1} parent=1 // pred_region
      %s1410 = ssub.s32 128, 128
      %1411 = vsyncadd [#allocation5], %s1410
      %s1413 = sshll.u32 [#allocation4], 4
      %s1414 = int_to_ptr.vmem [resolvable:$true] %s1413
      %1416 = dma.vmem_to_hbm [thread:$0]  %s1414, 128, %s13, [#allocation5]
    $region57: #{tpu_custom_call.1} parent=1 // pred_fallthru
      _
    // Predicated region
    $region58: #{tpu_custom_call.1} parent=1 // pred_check
      _
    $region59: #{tpu_custom_call.1} parent=1 // pred_check_branch
      %1418 = sbr.rel (0) target = $region61
    $region60: #{tpu_custom_call.1} parent=1 // pred_region
      %1419 = dma.done [#allocation5], 128
    $region61: #{tpu_custom_call.1} parent=1 // pred_fallthru
      _
    %1420 = vsyncpa [#allocation5], 1

</llo_original>
